<compile_context>
chip_gen: v7x
topology: tpu7x:2x2x1
jax: 0.10.0
libtpu: 0.0.40
codegen_flags: <defaults>
</compile_context>

<pallas_src>
from functools import partial

import jax
import jax.numpy as jnp
from jax import lax
from jax.experimental import pallas as pl
from jax.experimental.pallas import tpu as pltpu

_BN_EPS = 1e-5  # PyTorch BatchNorm2d default eps


def _build_kernel(H, W, Wp, L_out, n_pad):
    """Builds the fused per-batch kernel (all shape constants are static)."""
    inv_hw = 1.0 / float(H * W)
    n_pad_f = float(n_pad)

    def kernel(x_ref, dw_ref, sh1_ref, pw_ref, sh2_ref, mask_ref,
               fc1t_ref, fc1b_ref, fc2_ref, fc2b_ref, o_ref):
        # x_ref:    (1, Cin, L_in)  zero-padded input, spatial packed into lanes
        # dw_ref:   (Cin, 9)        depthwise taps (BN1 scale folded in)
        # sh1_ref:  (Cin, 1)        BN1 shift
        # pw_ref:   (Cout, Cin)     pointwise weights (BN2 scale folded in)
        # sh2_ref:  (Cout, 1)       BN2 shift
        # mask_ref: (1, L_out)      1.0 on valid pixels, 0.0 on pad columns
        # fc1t_ref: (Cout, Hid), fc1b_ref: (1, Hid)
        # fc2_ref:  (Cout, Hid), fc2b_ref: (Cout, 1)
        # o_ref:    (1, Cout, L_out)
        xp = x_ref[0]                                            # (Cin, L_in)

        # --- depthwise 3x3, stride 1: 9 static lane-shifted MACs ------------
        # Output lane l = h*Wp + w reads input lane l + kh*Wp + kw, so each
        # tap is a static lane-offset slice (lowered to cheap lane shifts;
        # pltpu.roll would be equivalent) times a per-channel weight.
        acc = None
        for kh in range(3):
            for kw in range(3):
                off = kh * Wp + kw
                tap = kh * 3 + kw
                term = xp[:, off:off + L_out] * dw_ref[:, tap:tap + 1]
                acc = term if acc is None else acc + term
        # BN1 shift + ReLU6, then zero the pad columns (w >= W) so they
        # contribute exactly 0 to the pointwise matmul.
        y1 = jnp.clip(acc + sh1_ref[...], 0.0, 6.0) * mask_ref[...]

        # --- pointwise 1x1 conv on the MXU: (Cout,Cin) @ (Cin, L_out) --------
        # y1 is already in the RHS layout the MXU wants (K on sublanes,
        # spatial on lanes) -> no relayout between the two convs.
        y2 = jnp.dot(pw_ref[...], y1.astype(pw_ref.dtype),
                     preferred_element_type=jnp.float32)         # (Cout, L_out)
        y2 = jnp.clip(y2 + sh2_ref[...], 0.0, 6.0)               # BN2 + ReLU6

        # --- SE squeeze fused into the epilogue ------------------------------
        # Masked columns of y2 are exactly clip(shift2, 0, 6); subtract them
        # analytically instead of a second masked pass over y2.
        pad_col = jnp.clip(sh2_ref[...], 0.0, 6.0)               # (Cout, 1)
        pooled = (jnp.sum(y2, axis=-1, keepdims=True)
                  - n_pad_f * pad_col) * inv_hw                  # (Cout, 1)

        # Tiny SE MLP (Cout -> Hid -> Cout); stays on VPU/XLU.
        h = jnp.sum(fc1t_ref[...] * pooled, axis=0, keepdims=True) + fc1b_ref[...]
        h = jnp.maximum(h, 0.0)                                  # (1, Hid)
        z = jnp.sum(fc2_ref[...] * h, axis=1, keepdims=True) + fc2b_ref[...]
        gate = jax.nn.sigmoid(z)                                 # (Cout, 1)

        o_ref[0] = (y2 * gate).astype(o_ref.dtype)

    return kernel


@partial(jax.jit, static_argnames=("use_bf16_matmul",))
def depthwise_forward(x, dw_weight, bn1_params, pw_weight, bn2_params,
                      fc1_w, fc1_b, fc2_w, fc2_b, use_bf16_matmul=False):
    """Forward pass of `Depthwise` (stride=1, eval-mode BN). x is NCHW."""
    g1, b1, m1, v1 = bn1_params
    g2, b2, m2, v2 = bn2_params
    B, Cin, H, W = x.shape
    Cout = pw_weight.shape[0]
    Hid = fc1_w.shape[0]
    Hp, Wp = H + 2, W + 2
    L_out = H * Wp                                 # lanes carrying the HxW outputs (stride Wp)
    L_in = ((Hp * Wp + 2 + 127) // 128) * 128      # 128-aligned padded-input lanes
    n_pad = L_out - H * W                          # masked pad columns per image

    # ---- fold eval-mode BatchNorm into the conv weights (weight-sized ops) ----
    s1 = g1 * lax.rsqrt(v1 + _BN_EPS)
    shift1 = (b1 - m1 * s1).reshape(Cin, 1)
    dw_col = (dw_weight[:, 0, :, :] * s1[:, None, None]).reshape(Cin, 9)
    s2 = g2 * lax.rsqrt(v2 + _BN_EPS)
    shift2 = (b2 - m2 * s2).reshape(Cout, 1)
    pw_w = pw_weight[:, :, 0, 0] * s2[:, None]                     # (Cout, Cin)
    if use_bf16_matmul:
        pw_w = pw_w.astype(jnp.bfloat16)    # MXU inputs in bf16, f32 accumulation
    fc1_wt = fc1_w.T                                               # (Cout, Hid)
    fc1_bb = fc1_b.reshape(1, Hid)
    fc2_bb = fc2_b.reshape(Cout, 1)

    # ---- NCHW-native packing: spatial zero-pad, flatten (Hp,Wp) into lanes ----
    x_padded = jnp.pad(x, ((0, 0), (0, 0), (1, 1), (1, 1))).reshape(B, Cin, Hp * Wp)
    x_packed = jnp.pad(x_padded, ((0, 0), (0, 0), (0, L_in - Hp * Wp)))

    # Valid-pixel mask over the packed output lanes (lane l -> pixel (l//Wp, l%Wp)).
    mask = ((jnp.arange(L_out) % Wp) < W).astype(x.dtype).reshape(1, L_out)

    flops = int(2 * B * Cin * L_out * 9 + 2 * B * Cout * Cin * L_out
                + 4 * B * Cout * Hid + 6 * B * Cout * L_out)
    bytes_accessed = int(4 * (B * Cin * L_in + B * Cout * L_out)
                         + 4 * (Cin * 10 + Cout * (Cin + 2 * Hid + 2) + L_out + Hid))

    kernel = _build_kernel(H, W, Wp, L_out, n_pad)

    out_flat = pl.pallas_call(
        kernel,
        out_shape=jax.ShapeDtypeStruct((B, Cout, L_out), x.dtype),
        grid_spec=pltpu.PrefetchScalarGridSpec(
            num_scalar_prefetch=0,
            grid=(B,),
            in_specs=[
                pl.BlockSpec((1, Cin, L_in), lambda b: (b, 0, 0)),
                pl.BlockSpec((Cin, 9), lambda b: (0, 0)),
                pl.BlockSpec((Cin, 1), lambda b: (0, 0)),
                pl.BlockSpec((Cout, Cin), lambda b: (0, 0)),
                pl.BlockSpec((Cout, 1), lambda b: (0, 0)),
                pl.BlockSpec((1, L_out), lambda b: (0, 0)),
                pl.BlockSpec((Cout, Hid), lambda b: (0, 0)),
                pl.BlockSpec((1, Hid), lambda b: (0, 0)),
                pl.BlockSpec((Cout, Hid), lambda b: (0, 0)),
                pl.BlockSpec((Cout, 1), lambda b: (0, 0)),
            ],
            out_specs=pl.BlockSpec((1, Cout, L_out), lambda b: (b, 0, 0)),
        ),
        compiler_params=pltpu.CompilerParams(
            dimension_semantics=("parallel",),       # per-batch steps are independent
            vmem_limit_bytes=32 * 1024 * 1024,       # explicit; actual use ~2 MiB here
        ),
        cost_estimate=pl.CostEstimate(flops=flops, transcendentals=int(B * Cout),
                                      bytes_accessed=bytes_accessed),
    )(x_packed, dw_col, shift1, pw_w, shift2, mask, fc1_wt, fc1_bb, fc2_w, fc2_bb)

    # (B, Cout, H*Wp) -> NCHW by dropping the 2 pad columns per row; no transpose.
    return out_flat.reshape(B, Cout, H, Wp)[:, :, :, :W]


def _reference_forward(x, dw_weight, bn1_params, pw_weight, bn2_params,
                       fc1_w, fc1_b, fc2_w, fc2_b):
    """Plain-JAX reference matching the PyTorch module (eval-mode BN)."""
    g1, b1, m1, v1 = bn1_params
    g2, b2, m2, v2 = bn2_params
    Cin = x.shape[1]

    def bn(y, g, b, m, v):
        s = (g * lax.rsqrt(v + _BN_EPS))[None, :, None, None]
        return (y - m[None, :, None, None]) * s + b[None, :, None, None]

    y = lax.conv_general_dilated(x, dw_weight, window_strides=(1, 1),
                                 padding=((1, 1), (1, 1)),
                                 dimension_numbers=("NCHW", "OIHW", "NCHW"),
                                 feature_group_count=Cin)
    y = jnp.clip(bn(y, g1, b1, m1, v1), 0.0, 6.0)
    y = lax.conv_general_dilated(y, pw_weight, window_strides=(1, 1),
                                 padding=((0, 0), (0, 0)),
                                 dimension_numbers=("NCHW", "OIHW", "NCHW"))
    y = jnp.clip(bn(y, g2, b2, m2, v2), 0.0, 6.0)
    pooled = jnp.mean(y, axis=(2, 3))
    h = jnp.maximum(pooled @ fc1_w.T + fc1_b, 0.0)
    s = jax.nn.sigmoid(h @ fc2_w.T + fc2_b)
    return y * s[:, :, None, None]


if __name__ == "__main__":
    B, Cin, H, W = 2, 16, 16, 16
    Cout = 256                 # SEBlock r=164 requires >=164 channels; 256 is lane-dense
    r = 164
    Hid = max(Cout // r, 1)    # = 1

    key = jax.random.PRNGKey(0)
    ks = jax.random.split(key, 12)

    x = jax.random.normal(ks[0], (B, Cin, H, W), dtype=jnp.float32)

    # PyTorch-layout parameters with PyTorch-like init bounds.
    dw_weight = jax.random.uniform(ks[1], (Cin, 1, 3, 3),
                                   minval=-1.0 / 3.0, maxval=1.0 / 3.0,
                                   dtype=jnp.float32)
    g1 = jax.random.uniform(ks[2], (Cin,), minval=0.5, maxval=1.5, dtype=jnp.float32)
    b1 = 0.1 * jax.random.normal(ks[3], (Cin,), dtype=jnp.float32)
    m1 = 0.1 * jax.random.normal(ks[4], (Cin,), dtype=jnp.float32)
    v1 = jax.random.uniform(ks[5], (Cin,), minval=0.5, maxval=1.5, dtype=jnp.float32)

    kpw = Cin ** -0.5
    pw_weight = jax.random.uniform(ks[6], (Cout, Cin, 1, 1),
                                   minval=-kpw, maxval=kpw, dtype=jnp.float32)
    g2 = jax.random.uniform(ks[7], (Cout,), minval=0.5, maxval=1.5, dtype=jnp.float32)
    b2 = 0.1 * jax.random.normal(ks[8], (Cout,), dtype=jnp.float32)
    m2 = 0.1 * jax.random.normal(ks[9], (Cout,), dtype=jnp.float32)
    v2 = jax.random.uniform(ks[10], (Cout,), minval=0.5, maxval=1.5, dtype=jnp.float32)

    kf = jax.random.split(ks[11], 4)
    bf1 = Cout ** -0.5
    fc1_w = jax.random.uniform(kf[0], (Hid, Cout), minval=-bf1, maxval=bf1, dtype=jnp.float32)
    fc1_b = jax.random.uniform(kf[1], (Hid,), minval=-bf1, maxval=bf1, dtype=jnp.float32)
    bf2 = Hid ** -0.5
    fc2_w = jax.random.uniform(kf[2], (Cout, Hid), minval=-bf2, maxval=bf2, dtype=jnp.float32)
    fc2_b = jax.random.uniform(kf[3], (Cout,), minval=-bf2, maxval=bf2, dtype=jnp.float32)

    ref = _reference_forward(x, dw_weight, (g1, b1, m1, v1),
                             pw_weight, (g2, b2, m2, v2),
                             fc1_w, fc1_b, fc2_w, fc2_b)

    # f32 path (default): must match the PyTorch forward tightly.
    out = depthwise_forward(x, dw_weight, (g1, b1, m1, v1),
                            pw_weight, (g2, b2, m2, v2),
                            fc1_w, fc1_b, fc2_w, fc2_b)
    jax.block_until_ready(out)
    assert out.shape == (B, Cout, H, W)
    assert jnp.allclose(out, ref, atol=2e-3, rtol=2e-3), \
        float(jnp.max(jnp.abs(out - ref)))

    # bf16-at-the-MXU path (v6e/v7x fast path): sanity-check with a loose
    # tolerance appropriate for bf16 matmul inputs (f32 accumulation).
    out_bf16 = depthwise_forward(x, dw_weight, (g1, b1, m1, v1),
                                 pw_weight, (g2, b2, m2, v2),
                                 fc1_w, fc1_b, fc2_w, fc2_b,
                                 use_bf16_matmul=True)
    jax.block_until_ready(out_bf16)
    assert jnp.allclose(out_bf16, ref, atol=2.5e-1, rtol=5e-2), \
        float(jnp.max(jnp.abs(out_bf16 - ref)))

    print("KERNEL_OK")
</pallas_src>

<mosaic_0001>
module attributes {stable_mosaic.version = 11 : i64} {
  func.func @kernel(%arg0: i32, %arg1: memref<1x16x384xf32, #tpu.memory_space<vmem>>, %arg2: memref<16x9xf32, #tpu.memory_space<vmem>>, %arg3: memref<16x1xf32, #tpu.memory_space<vmem>>, %arg4: memref<256x16xf32, #tpu.memory_space<vmem>>, %arg5: memref<256x1xf32, #tpu.memory_space<vmem>>, %arg6: memref<1x288xf32, #tpu.memory_space<vmem>>, %arg7: memref<256x1xf32, #tpu.memory_space<vmem>>, %arg8: memref<1x1xf32, #tpu.memory_space<vmem>>, %arg9: memref<256x1xf32, #tpu.memory_space<vmem>>, %arg10: memref<256x1xf32, #tpu.memory_space<vmem>>, %arg11: memref<1x256x288xf32, #tpu.memory_space<vmem>>) attributes {dimension_semantics = [#tpu.dimension_semantics<parallel>], iteration_bounds = array<i64: 2>, scalar_prefetch = 0 : i64, scratch_operands = 0 : i64, tpu.core_type = #tpu.core_type<tc>, window_params = [{transform_indices = @transform_0, window_bounds = array<i64: 1, 16, 384>}, {pipeline_mode = #tpu.pipeline_mode<synchronous>, transform_indices = @transform_1, window_bounds = array<i64: 16, 9>}, {pipeline_mode = #tpu.pipeline_mode<synchronous>, transform_indices = @transform_2, window_bounds = array<i64: 16, 1>}, {pipeline_mode = #tpu.pipeline_mode<synchronous>, transform_indices = @transform_3, window_bounds = array<i64: 256, 16>}, {pipeline_mode = #tpu.pipeline_mode<synchronous>, transform_indices = @transform_4, window_bounds = array<i64: 256, 1>}, {pipeline_mode = #tpu.pipeline_mode<synchronous>, transform_indices = @transform_5, window_bounds = array<i64: 1, 288>}, {pipeline_mode = #tpu.pipeline_mode<synchronous>, transform_indices = @transform_6, window_bounds = array<i64: 256, 1>}, {pipeline_mode = #tpu.pipeline_mode<synchronous>, transform_indices = @transform_7, window_bounds = array<i64: 1, 1>}, {pipeline_mode = #tpu.pipeline_mode<synchronous>, transform_indices = @transform_8, window_bounds = array<i64: 256, 1>}, {pipeline_mode = #tpu.pipeline_mode<synchronous>, transform_indices = @transform_9, window_bounds = array<i64: 256, 1>}, {transform_indices = @transform_10, window_bounds = array<i64: 1, 256, 288>}]} {
    %c0 = arith.constant 0 : index
    %c0_0 = arith.constant 0 : index
    %c0_1 = arith.constant 0 : index
    %0 = vector.load %arg1[%c0, %c0_0, %c0_1] : memref<1x16x384xf32, #tpu.memory_space<vmem>>, vector<1x16x384xf32>
    %1 = vector.shape_cast %0 : vector<1x16x384xf32> to vector<16x384xf32>
    %2 = vector.extract_strided_slice %1 {offsets = [0, 0], sizes = [16, 288], strides = [1, 1]} : vector<16x384xf32> to vector<16x288xf32>
    %c0_2 = arith.constant 0 : index
    %c0_3 = arith.constant 0 : index
    %3 = vector.load %arg2[%c0_2, %c0_3] : memref<16x9xf32, #tpu.memory_space<vmem>>, vector<16x1xf32>
    %4 = vector.broadcast %3 : vector<16x1xf32> to vector<16x288xf32>
    %5 = arith.mulf %2, %4 : vector<16x288xf32>
    %6 = vector.extract_strided_slice %1 {offsets = [0, 1], sizes = [16, 288], strides = [1, 1]} : vector<16x384xf32> to vector<16x288xf32>
    %c0_4 = arith.constant 0 : index
    %c1 = arith.constant 1 : index
    %7 = vector.load %arg2[%c0_4, %c1] : memref<16x9xf32, #tpu.memory_space<vmem>>, vector<16x1xf32>
    %8 = vector.broadcast %7 : vector<16x1xf32> to vector<16x288xf32>
    %9 = arith.mulf %6, %8 : vector<16x288xf32>
    %10 = arith.addf %5, %9 : vector<16x288xf32>
    %11 = vector.extract_strided_slice %1 {offsets = [0, 2], sizes = [16, 288], strides = [1, 1]} : vector<16x384xf32> to vector<16x288xf32>
    %c0_5 = arith.constant 0 : index
    %c2 = arith.constant 2 : index
    %12 = vector.load %arg2[%c0_5, %c2] : memref<16x9xf32, #tpu.memory_space<vmem>>, vector<16x1xf32>
    %13 = vector.broadcast %12 : vector<16x1xf32> to vector<16x288xf32>
    %14 = arith.mulf %11, %13 : vector<16x288xf32>
    %15 = arith.addf %10, %14 : vector<16x288xf32>
    %16 = vector.extract_strided_slice %1 {offsets = [0, 18], sizes = [16, 288], strides = [1, 1]} : vector<16x384xf32> to vector<16x288xf32>
    %c0_6 = arith.constant 0 : index
    %c3 = arith.constant 3 : index
    %17 = vector.load %arg2[%c0_6, %c3] : memref<16x9xf32, #tpu.memory_space<vmem>>, vector<16x1xf32>
    %18 = vector.broadcast %17 : vector<16x1xf32> to vector<16x288xf32>
    %19 = arith.mulf %16, %18 : vector<16x288xf32>
    %20 = arith.addf %15, %19 : vector<16x288xf32>
    %21 = vector.extract_strided_slice %1 {offsets = [0, 19], sizes = [16, 288], strides = [1, 1]} : vector<16x384xf32> to vector<16x288xf32>
    %c0_7 = arith.constant 0 : index
    %c4 = arith.constant 4 : index
    %22 = vector.load %arg2[%c0_7, %c4] : memref<16x9xf32, #tpu.memory_space<vmem>>, vector<16x1xf32>
    %23 = vector.broadcast %22 : vector<16x1xf32> to vector<16x288xf32>
    %24 = arith.mulf %21, %23 : vector<16x288xf32>
    %25 = arith.addf %20, %24 : vector<16x288xf32>
    %26 = vector.extract_strided_slice %1 {offsets = [0, 20], sizes = [16, 288], strides = [1, 1]} : vector<16x384xf32> to vector<16x288xf32>
    %c0_8 = arith.constant 0 : index
    %c5 = arith.constant 5 : index
    %27 = vector.load %arg2[%c0_8, %c5] : memref<16x9xf32, #tpu.memory_space<vmem>>, vector<16x1xf32>
    %28 = vector.broadcast %27 : vector<16x1xf32> to vector<16x288xf32>
    %29 = arith.mulf %26, %28 : vector<16x288xf32>
    %30 = arith.addf %25, %29 : vector<16x288xf32>
    %31 = vector.extract_strided_slice %1 {offsets = [0, 36], sizes = [16, 288], strides = [1, 1]} : vector<16x384xf32> to vector<16x288xf32>
    %c0_9 = arith.constant 0 : index
    %c6 = arith.constant 6 : index
    %32 = vector.load %arg2[%c0_9, %c6] : memref<16x9xf32, #tpu.memory_space<vmem>>, vector<16x1xf32>
    %33 = vector.broadcast %32 : vector<16x1xf32> to vector<16x288xf32>
    %34 = arith.mulf %31, %33 : vector<16x288xf32>
    %35 = arith.addf %30, %34 : vector<16x288xf32>
    %36 = vector.extract_strided_slice %1 {offsets = [0, 37], sizes = [16, 288], strides = [1, 1]} : vector<16x384xf32> to vector<16x288xf32>
    %c0_10 = arith.constant 0 : index
    %c7 = arith.constant 7 : index
    %37 = vector.load %arg2[%c0_10, %c7] : memref<16x9xf32, #tpu.memory_space<vmem>>, vector<16x1xf32>
    %38 = vector.broadcast %37 : vector<16x1xf32> to vector<16x288xf32>
    %39 = arith.mulf %36, %38 : vector<16x288xf32>
    %40 = arith.addf %35, %39 : vector<16x288xf32>
    %41 = vector.extract_strided_slice %1 {offsets = [0, 38], sizes = [16, 288], strides = [1, 1]} : vector<16x384xf32> to vector<16x288xf32>
    %c0_11 = arith.constant 0 : index
    %c8 = arith.constant 8 : index
    %42 = vector.load %arg2[%c0_11, %c8] : memref<16x9xf32, #tpu.memory_space<vmem>>, vector<16x1xf32>
    %43 = vector.broadcast %42 : vector<16x1xf32> to vector<16x288xf32>
    %44 = arith.mulf %41, %43 : vector<16x288xf32>
    %45 = arith.addf %40, %44 : vector<16x288xf32>
    %c0_12 = arith.constant 0 : index
    %c0_13 = arith.constant 0 : index
    %46 = vector.load %arg3[%c0_12, %c0_13] : memref<16x1xf32, #tpu.memory_space<vmem>>, vector<16x1xf32>
    %47 = vector.broadcast %46 : vector<16x1xf32> to vector<16x288xf32>
    %48 = arith.addf %45, %47 : vector<16x288xf32>
    %cst = arith.constant 0.000000e+00 : f32
    %cst_14 = arith.constant 6.000000e+00 : f32
    %49 = vector.broadcast %cst : f32 to vector<16x288xf32>
    %50 = arith.maximumf %49, %48 : vector<16x288xf32>
    %51 = vector.broadcast %cst_14 : f32 to vector<16x288xf32>
    %52 = arith.minimumf %51, %50 : vector<16x288xf32>
    %c0_15 = arith.constant 0 : index
    %c0_16 = arith.constant 0 : index
    %53 = vector.load %arg6[%c0_15, %c0_16] : memref<1x288xf32, #tpu.memory_space<vmem>>, vector<1x288xf32>
    %54 = vector.broadcast %53 : vector<1x288xf32> to vector<16x288xf32>
    %55 = arith.mulf %52, %54 : vector<16x288xf32>
    %c0_17 = arith.constant 0 : index
    %c0_18 = arith.constant 0 : index
    %56 = vector.load %arg4[%c0_17, %c0_18] : memref<256x16xf32, #tpu.memory_space<vmem>>, vector<256x16xf32>
    %cst_19 = arith.constant dense<0.000000e+00> : vector<256x288xf32>
    %57 = tpu.matmul %56, %55, %cst_19 {dimension_numbers = #tpu.dot_dimension_numbers<[1], [0], [0], [1], [0, 0, 1, 1], [], []>} : vector<256x16xf32>, vector<16x288xf32>, vector<256x288xf32> -> vector<256x288xf32>
    %c0_20 = arith.constant 0 : index
    %c0_21 = arith.constant 0 : index
    %58 = vector.load %arg5[%c0_20, %c0_21] : memref<256x1xf32, #tpu.memory_space<vmem>>, vector<256x1xf32>
    %59 = vector.broadcast %58 : vector<256x1xf32> to vector<256x288xf32>
    %60 = arith.addf %57, %59 : vector<256x288xf32>
    %cst_22 = arith.constant 0.000000e+00 : f32
    %cst_23 = arith.constant 6.000000e+00 : f32
    %61 = vector.broadcast %cst_22 : f32 to vector<256x288xf32>
    %62 = arith.maximumf %61, %60 : vector<256x288xf32>
    %63 = vector.broadcast %cst_23 : f32 to vector<256x288xf32>
    %64 = arith.minimumf %63, %62 : vector<256x288xf32>
    %c0_24 = arith.constant 0 : index
    %c0_25 = arith.constant 0 : index
    %65 = vector.load %arg5[%c0_24, %c0_25] : memref<256x1xf32, #tpu.memory_space<vmem>>, vector<256x1xf32>
    %cst_26 = arith.constant 0.000000e+00 : f32
    %cst_27 = arith.constant 6.000000e+00 : f32
    %66 = vector.broadcast %cst_26 : f32 to vector<256x1xf32>
    %67 = arith.maximumf %66, %65 : vector<256x1xf32>
    %68 = vector.broadcast %cst_27 : f32 to vector<256x1xf32>
    %69 = arith.minimumf %68, %67 : vector<256x1xf32>
    %cst_28 = arith.constant dense<0.000000e+00> : vector<256xf32>
    %70 = vector.multi_reduction <add>, %64, %cst_28 [1] : vector<256x288xf32> to vector<256xf32>
    %71 = vector.shape_cast %70 : vector<256xf32> to vector<256x1xf32>
    %cst_29 = arith.constant 3.200000e+01 : f32
    %72 = vector.broadcast %cst_29 : f32 to vector<256x1xf32>
    %73 = arith.mulf %72, %69 : vector<256x1xf32>
    %74 = arith.subf %71, %73 : vector<256x1xf32>
    %cst_30 = arith.constant 3.906250e-03 : f32
    %75 = vector.broadcast %cst_30 : f32 to vector<256x1xf32>
    %76 = arith.mulf %74, %75 : vector<256x1xf32>
    %c0_31 = arith.constant 0 : index
    %c0_32 = arith.constant 0 : index
    %77 = vector.load %arg7[%c0_31, %c0_32] : memref<256x1xf32, #tpu.memory_space<vmem>>, vector<256x1xf32>
    %78 = arith.mulf %77, %76 : vector<256x1xf32>
    %cst_33 = arith.constant dense<0.000000e+00> : vector<1xf32>
    %79 = vector.multi_reduction <add>, %78, %cst_33 [0] : vector<256x1xf32> to vector<1xf32>
    %80 = vector.shape_cast %79 : vector<1xf32> to vector<1x1xf32>
    %c0_34 = arith.constant 0 : index
    %c0_35 = arith.constant 0 : index
    %81 = vector.load %arg8[%c0_34, %c0_35] : memref<1x1xf32, #tpu.memory_space<vmem>>, vector<1x1xf32>
    %82 = arith.addf %80, %81 : vector<1x1xf32>
    %cst_36 = arith.constant 0.000000e+00 : f32
    %83 = vector.broadcast %cst_36 : f32 to vector<1x1xf32>
    %84 = arith.maximumf %82, %83 : vector<1x1xf32>
    %c0_37 = arith.constant 0 : index
    %c0_38 = arith.constant 0 : index
    %85 = vector.load %arg9[%c0_37, %c0_38] : memref<256x1xf32, #tpu.memory_space<vmem>>, vector<256x1xf32>
    %86 = vector.broadcast %84 : vector<1x1xf32> to vector<256x1xf32>
    %87 = arith.mulf %85, %86 : vector<256x1xf32>
    %cst_39 = arith.constant dense<0.000000e+00> : vector<256xf32>
    %88 = vector.multi_reduction <add>, %87, %cst_39 [1] : vector<256x1xf32> to vector<256xf32>
    %89 = vector.shape_cast %88 : vector<256xf32> to vector<256x1xf32>
    %c0_40 = arith.constant 0 : index
    %c0_41 = arith.constant 0 : index
    %90 = vector.load %arg10[%c0_40, %c0_41] : memref<256x1xf32, #tpu.memory_space<vmem>>, vector<256x1xf32>
    %91 = arith.addf %89, %90 : vector<256x1xf32>
    %92 = arith.negf %91 : vector<256x1xf32>
    %93 = math.exp %92 : vector<256x1xf32>
    %cst_42 = arith.constant 1.000000e+00 : f32
    %94 = vector.broadcast %cst_42 : f32 to vector<256x1xf32>
    %95 = arith.addf %94, %93 : vector<256x1xf32>
    %96 = arith.divf %94, %95 : vector<256x1xf32>
    %97 = vector.broadcast %96 : vector<256x1xf32> to vector<256x288xf32>
    %98 = arith.mulf %64, %97 : vector<256x288xf32>
    %c0_43 = arith.constant 0 : index
    %c0_44 = arith.constant 0 : index
    %c0_45 = arith.constant 0 : index
    %99 = vector.load %arg11[%c0_43, %c0_44, %c0_45] : memref<1x256x288xf32, #tpu.memory_space<vmem>>, vector<1x256x288xf32>
    %100 = vector.shape_cast %99 : vector<1x256x288xf32> to vector<256x288xf32>
    %101 = vector.shape_cast %98 : vector<256x288xf32> to vector<1x256x288xf32>
    tpu.vector_store %arg11[%c0_43, %c0_44, %c0_45], %101 {strides = array<i32>} : memref<1x256x288xf32, #tpu.memory_space<vmem>>, vector<1x256x288xf32>,
    return
  }
  func.func @transform_0(%arg0: i32) -> (i32, i32, i32) {
    %c0_i32 = arith.constant 0 : i32
    %c0_i32_0 = arith.constant 0 : i32
    %c0_i32_1 = arith.constant 0 : i32
    return %arg0, %c0_i32, %c0_i32_0 : i32, i32, i32
  }
  func.func @transform_1(%arg0: i32) -> (i32, i32) {
    %c0_i32 = arith.constant 0 : i32
    %c0_i32_0 = arith.constant 0 : i32
    %c0_i32_1 = arith.constant 0 : i32
    return %c0_i32, %c0_i32_0 : i32, i32
  }
  func.func @transform_2(%arg0: i32) -> (i32, i32) {
    %c0_i32 = arith.constant 0 : i32
    %c0_i32_0 = arith.constant 0 : i32
    %c0_i32_1 = arith.constant 0 : i32
    return %c0_i32, %c0_i32_0 : i32, i32
  }
  func.func @transform_3(%arg0: i32) -> (i32, i32) {
    %c0_i32 = arith.constant 0 : i32
    %c0_i32_0 = arith.constant 0 : i32
    %c0_i32_1 = arith.constant 0 : i32
    return %c0_i32, %c0_i32_0 : i32, i32
  }
  func.func @transform_4(%arg0: i32) -> (i32, i32) {
    %c0_i32 = arith.constant 0 : i32
    %c0_i32_0 = arith.constant 0 : i32
    %c0_i32_1 = arith.constant 0 : i32
    return %c0_i32, %c0_i32_0 : i32, i32
  }
  func.func @transform_5(%arg0: i32) -> (i32, i32) {
    %c0_i32 = arith.constant 0 : i32
    %c0_i32_0 = arith.constant 0 : i32
    %c0_i32_1 = arith.constant 0 : i32
    return %c0_i32, %c0_i32_0 : i32, i32
  }
  func.func @transform_6(%arg0: i32) -> (i32, i32) {
    %c0_i32 = arith.constant 0 : i32
    %c0_i32_0 = arith.constant 0 : i32
    %c0_i32_1 = arith.constant 0 : i32
    return %c0_i32, %c0_i32_0 : i32, i32
  }
  func.func @transform_7(%arg0: i32) -> (i32, i32) {
    %c0_i32 = arith.constant 0 : i32
    %c0_i32_0 = arith.constant 0 : i32
    %c0_i32_1 = arith.constant 0 : i32
    return %c0_i32, %c0_i32_0 : i32, i32
  }
  func.func @transform_8(%arg0: i32) -> (i32, i32) {
    %c0_i32 = arith.constant 0 : i32
    %c0_i32_0 = arith.constant 0 : i32
    %c0_i32_1 = arith.constant 0 : i32
    return %c0_i32, %c0_i32_0 : i32, i32
  }
  func.func @transform_9(%arg0: i32) -> (i32, i32) {
    %c0_i32 = arith.constant 0 : i32
    %c0_i32_0 = arith.constant 0 : i32
    %c0_i32_1 = arith.constant 0 : i32
    return %c0_i32, %c0_i32_0 : i32, i32
  }
  func.func @transform_10(%arg0: i32) -> (i32, i32, i32) {
    %c0_i32 = arith.constant 0 : i32
    %c0_i32_0 = arith.constant 0 : i32
    %c0_i32_1 = arith.constant 0 : i32
    return %arg0, %c0_i32, %c0_i32_0 : i32, i32, i32
  }
}

</mosaic_0001>

<llo_original>
// kernel: depthwise_forward.1
$region0: #{depthwise_forward.1}
  #allocation0 [shape = 'u32[]', space=smem, size = 0x4, offset = 0x4, fixed_abs, tag = 'smem constant byte address 0x4 - core index']
  #allocation1 [shape = 'u32[144,128]{1,0:T(1,128)}', space=vmem, size = 0x12000, scoped, tag = 'internal scratch']
  #allocation2 [shape = 'f32[1,1]{1,0:T(1,128)S(1)}', space=vmem, size = 0x200, scoped, tag = 'scoped memory for depthwise_forward.1']
  %s0 = inlined_call_operand.vmem [shape: f32[2,16,384], index: 0, kind: input, shape index: {}]
  %s1 = inlined_call_operand.vmem [shape: f32[16,9], index: 1, kind: input, shape index: {}]
  %s2 = inlined_call_operand.vmem [shape: f32[16,1], index: 2, kind: input, shape index: {}]
  %s3 = inlined_call_operand.vmem [shape: f32[256,16], index: 3, kind: input, shape index: {}]
  %s4 = inlined_call_operand.vmem [shape: f32[256,1], index: 4, kind: input, shape index: {}]
  %s5 = inlined_call_operand.vmem [shape: f32[1,288], index: 5, kind: input, shape index: {}]
  %s6 = inlined_call_operand.vmem [shape: f32[256,1], index: 6, kind: input, shape index: {}]
  %s7 = inlined_call_operand.<no memory space> [shape: f32[1,1], index: 7, kind: input, shape index: {}]
  %s8 = inlined_call_operand.vmem [shape: f32[256,1], index: 8, kind: input, shape index: {}]
  %s9 = inlined_call_operand.vmem [shape: f32[256,1], index: 9, kind: input, shape index: {}]
  %s10 = inlined_call_operand.vmem [shape: f32[2,256,288], index: 10, kind: output, shape index: {}]
  %s11 = sld [smem:[#allocation0]]
  $region73: #{depthwise_forward.1} parent=0
    _
  %s13 = ssub.s32 1, %s11
  %s14 = scalar_select 0, %s13, %s11
  %v15 = vstv %s7
  %16 = vst [vmem:[#allocation2] sm:$0x1] %v15
  loop: start=0, step=1, limit=4
  $region2: #{depthwise_forward.1} parent=0 // loop_pre_header
    _
  $region3: #{depthwise_forward.1} parent=0 // loop_header
    %s18 = sphi 0, %s22
    %p19 = scmp.ge.s32.totalorder %s18, 4
    %s28 = sphi 0, %s30
    %s31 = sphi 0, %s28
    %s32 = sphi 0, %s31
    %s48 = sphi 0, %s32
    %s52 = sphi 0, %s52
    %s54 = sphi 0, %s52
    %s55 = sphi 0, %s54
    %s69 = sphi 0, %s55
    %s73 = sphi 0, %s73
    %s75 = sphi 0, %s73
    %s76 = sphi 0, %s75
    %s90 = sphi 0, %s76
    %s94 = sphi 0, %s94
    %s96 = sphi 0, %s94
    %s97 = sphi 0, %s96
    %s111 = sphi 0, %s97
    %s115 = sphi 0, %s115
    %s117 = sphi 0, %s115
    %s118 = sphi 0, %s117
    %s132 = sphi 0, %s118
    %s136 = sphi 0, %s136
    %s138 = sphi 0, %s136
    %s139 = sphi 0, %s138
    %s153 = sphi 0, %s139
    %s157 = sphi 0, %s157
    %s159 = sphi 0, %s157
    %s160 = sphi 0, %s159
    %s174 = sphi 0, %s160
    %s178 = sphi 0, %s178
    %s180 = sphi 0, %s178
    %s181 = sphi 0, %s180
    %s195 = sphi 0, %s181
    %s199 = sphi 0, %s199
    %s201 = sphi 0, %s199
    %s202 = sphi 0, %s201
    %s216 = sphi 0, %s202
    %s220 = sphi 0, %s220
    %s222 = sphi 0, %s220
    %s223 = sphi 0, %s222
    %s237 = sphi 0, %s223
    %s243 = sphi 0, %s245
    %s246 = sphi 0, %s243
    %s247 = sphi 0, %s246
    %s263 = sphi 0, %s247
  $region4: #{depthwise_forward.1} parent=0 // loop_header_branch
    %21 = sbr.rel (%p19) target = $region8
  $region5: #{depthwise_forward.1} parent=0 // loop_body
    %s23 = ssub.s32 %s18, 1
    %s24 = ssub.s32 %s18, 2
    %s25 = sadd.s32 %s18, 1
    %s26 = ssub.s32 %s18, %s25
    %p27 = scmp.eq.s32.totalorder %s26, 0
    %s29 = sadd.s32 %s28, 1
    %s30 = scalar_select %p27, %s28, %s29
    %p33 = pneg %p27
    %p34 = scmp.eq.s32.totalorder %s18, 1
    %p35 = por %p33, %p34
    %p36 = scmp.ne.s32.totalorder %s28, %s31
    %p37 = scmp.eq.s32.totalorder %s18, 0
    %p38 = por %p36, %p37
    %p39 = scmp.ne.s32.totalorder %s28, %s31
    %p40 = scmp.eq.s32.totalorder %s23, 1
    %p41 = por %p39, %p40
    %p42 = scmp.ne.s32.totalorder %s31, %s32
    %p43 = scmp.eq.s32.totalorder %s23, 0
    %p44 = por %p42, %p43
    %p45 = scmp.ne.s32.totalorder %s31, %s32
    %p46 = scmp.eq.s32.totalorder %s24, 1
    %p47 = por %p45, %p46
    %p49 = scmp.ne.s32.totalorder %s32, %s48
    %p50 = scmp.eq.s32.totalorder %s24, 0
    %p51 = por %p49, %p50
    %s53 = sadd.s32 %s52, 1
    %p56 = scmp.eq.s32.totalorder %s18, 1
    %p57 = scmp.ne.s32.totalorder %s52, %s54
    %p58 = scmp.eq.s32.totalorder %s18, 0
    %p59 = por %p57, %p58
    %p60 = scmp.ne.s32.totalorder %s52, %s54
    %p61 = scmp.eq.s32.totalorder %s23, 1
    %p62 = por %p60, %p61
    %p63 = scmp.ne.s32.totalorder %s54, %s55
    %p64 = scmp.eq.s32.totalorder %s23, 0
    %p65 = por %p63, %p64
    %p66 = scmp.ne.s32.totalorder %s54, %s55
    %p67 = scmp.eq.s32.totalorder %s24, 1
    %p68 = por %p66, %p67
    %p70 = scmp.ne.s32.totalorder %s55, %s69
    %p71 = scmp.eq.s32.totalorder %s24, 0
    %p72 = por %p70, %p71
    %s74 = sadd.s32 %s73, 1
    %p77 = scmp.eq.s32.totalorder %s18, 1
    %p78 = scmp.ne.s32.totalorder %s73, %s75
    %p79 = scmp.eq.s32.totalorder %s18, 0
    %p80 = por %p78, %p79
    %p81 = scmp.ne.s32.totalorder %s73, %s75
    %p82 = scmp.eq.s32.totalorder %s23, 1
    %p83 = por %p81, %p82
    %p84 = scmp.ne.s32.totalorder %s75, %s76
    %p85 = scmp.eq.s32.totalorder %s23, 0
    %p86 = por %p84, %p85
    %p87 = scmp.ne.s32.totalorder %s75, %s76
    %p88 = scmp.eq.s32.totalorder %s24, 1
    %p89 = por %p87, %p88
    %p91 = scmp.ne.s32.totalorder %s76, %s90
    %p92 = scmp.eq.s32.totalorder %s24, 0
    %p93 = por %p91, %p92
    %s95 = sadd.s32 %s94, 1
    %p98 = scmp.eq.s32.totalorder %s18, 1
    %p99 = scmp.ne.s32.totalorder %s94, %s96
    %p100 = scmp.eq.s32.totalorder %s18, 0
    %p101 = por %p99, %p100
    %p102 = scmp.ne.s32.totalorder %s94, %s96
    %p103 = scmp.eq.s32.totalorder %s23, 1
    %p104 = por %p102, %p103
    %p105 = scmp.ne.s32.totalorder %s96, %s97
    %p106 = scmp.eq.s32.totalorder %s23, 0
    %p107 = por %p105, %p106
    %p108 = scmp.ne.s32.totalorder %s96, %s97
    %p109 = scmp.eq.s32.totalorder %s24, 1
    %p110 = por %p108, %p109
    %p112 = scmp.ne.s32.totalorder %s97, %s111
    %p113 = scmp.eq.s32.totalorder %s24, 0
    %p114 = por %p112, %p113
    %s116 = sadd.s32 %s115, 1
    %p119 = scmp.eq.s32.totalorder %s18, 1
    %p120 = scmp.ne.s32.totalorder %s115, %s117
    %p121 = scmp.eq.s32.totalorder %s18, 0
    %p122 = por %p120, %p121
    %p123 = scmp.ne.s32.totalorder %s115, %s117
    %p124 = scmp.eq.s32.totalorder %s23, 1
    %p125 = por %p123, %p124
    %p126 = scmp.ne.s32.totalorder %s117, %s118
    %p127 = scmp.eq.s32.totalorder %s23, 0
    %p128 = por %p126, %p127
    %p129 = scmp.ne.s32.totalorder %s117, %s118
    %p130 = scmp.eq.s32.totalorder %s24, 1
    %p131 = por %p129, %p130
    %p133 = scmp.ne.s32.totalorder %s118, %s132
    %p134 = scmp.eq.s32.totalorder %s24, 0
    %p135 = por %p133, %p134
    %s137 = sadd.s32 %s136, 1
    %p140 = scmp.eq.s32.totalorder %s18, 1
    %p141 = scmp.ne.s32.totalorder %s136, %s138
    %p142 = scmp.eq.s32.totalorder %s18, 0
    %p143 = por %p141, %p142
    %p144 = scmp.ne.s32.totalorder %s136, %s138
    %p145 = scmp.eq.s32.totalorder %s23, 1
    %p146 = por %p144, %p145
    %p147 = scmp.ne.s32.totalorder %s138, %s139
    %p148 = scmp.eq.s32.totalorder %s23, 0
    %p149 = por %p147, %p148
    %p150 = scmp.ne.s32.totalorder %s138, %s139
    %p151 = scmp.eq.s32.totalorder %s24, 1
    %p152 = por %p150, %p151
    %p154 = scmp.ne.s32.totalorder %s139, %s153
    %p155 = scmp.eq.s32.totalorder %s24, 0
    %p156 = por %p154, %p155
    %s158 = sadd.s32 %s157, 1
    %p161 = scmp.eq.s32.totalorder %s18, 1
    %p162 = scmp.ne.s32.totalorder %s157, %s159
    %p163 = scmp.eq.s32.totalorder %s18, 0
    %p164 = por %p162, %p163
    %p165 = scmp.ne.s32.totalorder %s157, %s159
    %p166 = scmp.eq.s32.totalorder %s23, 1
    %p167 = por %p165, %p166
    %p168 = scmp.ne.s32.totalorder %s159, %s160
    %p169 = scmp.eq.s32.totalorder %s23, 0
    %p170 = por %p168, %p169
    %p171 = scmp.ne.s32.totalorder %s159, %s160
    %p172 = scmp.eq.s32.totalorder %s24, 1
    %p173 = por %p171, %p172
    %p175 = scmp.ne.s32.totalorder %s160, %s174
    %p176 = scmp.eq.s32.totalorder %s24, 0
    %p177 = por %p175, %p176
    %s179 = sadd.s32 %s178, 1
    %p182 = scmp.eq.s32.totalorder %s18, 1
    %p183 = scmp.ne.s32.totalorder %s178, %s180
    %p184 = scmp.eq.s32.totalorder %s18, 0
    %p185 = por %p183, %p184
    %p186 = scmp.ne.s32.totalorder %s178, %s180
    %p187 = scmp.eq.s32.totalorder %s23, 1
    %p188 = por %p186, %p187
    %p189 = scmp.ne.s32.totalorder %s180, %s181
    %p190 = scmp.eq.s32.totalorder %s23, 0
    %p191 = por %p189, %p190
    %p192 = scmp.ne.s32.totalorder %s180, %s181
    %p193 = scmp.eq.s32.totalorder %s24, 1
    %p194 = por %p192, %p193
    %p196 = scmp.ne.s32.totalorder %s181, %s195
    %p197 = scmp.eq.s32.totalorder %s24, 0
    %p198 = por %p196, %p197
    %s200 = sadd.s32 %s199, 1
    %p203 = scmp.eq.s32.totalorder %s18, 1
    %p204 = scmp.ne.s32.totalorder %s199, %s201
    %p205 = scmp.eq.s32.totalorder %s18, 0
    %p206 = por %p204, %p205
    %p207 = scmp.ne.s32.totalorder %s199, %s201
    %p208 = scmp.eq.s32.totalorder %s23, 1
    %p209 = por %p207, %p208
    %p210 = scmp.ne.s32.totalorder %s201, %s202
    %p211 = scmp.eq.s32.totalorder %s23, 0
    %p212 = por %p210, %p211
    %p213 = scmp.ne.s32.totalorder %s201, %s202
    %p214 = scmp.eq.s32.totalorder %s24, 1
    %p215 = por %p213, %p214
    %p217 = scmp.ne.s32.totalorder %s202, %s216
    %p218 = scmp.eq.s32.totalorder %s24, 0
    %p219 = por %p217, %p218
    %s221 = sadd.s32 %s220, 1
    %p224 = scmp.eq.s32.totalorder %s18, 1
    %p225 = scmp.ne.s32.totalorder %s220, %s222
    %p226 = scmp.eq.s32.totalorder %s18, 0
    %p227 = por %p225, %p226
    %p228 = scmp.ne.s32.totalorder %s220, %s222
    %p229 = scmp.eq.s32.totalorder %s23, 1
    %p230 = por %p228, %p229
    %p231 = scmp.ne.s32.totalorder %s222, %s223
    %p232 = scmp.eq.s32.totalorder %s23, 0
    %p233 = por %p231, %p232
    %p234 = scmp.ne.s32.totalorder %s222, %s223
    %p235 = scmp.eq.s32.totalorder %s24, 1
    %p236 = por %p234, %p235
    %p238 = scmp.ne.s32.totalorder %s223, %s237
    %p239 = scmp.eq.s32.totalorder %s24, 0
    %p240 = por %p238, %p239
    %s241 = ssub.s32 %s18, %s25
    %p242 = scmp.eq.s32.totalorder %s241, 0
    %s244 = sadd.s32 %s243, 1
    %s245 = scalar_select %p242, %s243, %s244
    %p248 = pneg %p242
    %p249 = scmp.eq.s32.totalorder %s18, 1
    %p250 = por %p248, %p249
    %p251 = scmp.ne.s32.totalorder %s243, %s246
    %p252 = scmp.eq.s32.totalorder %s18, 0
    %p253 = por %p251, %p252
    %p254 = scmp.ne.s32.totalorder %s243, %s246
    %p255 = scmp.eq.s32.totalorder %s23, 1
    %p256 = por %p254, %p255
    %p257 = scmp.ne.s32.totalorder %s246, %s247
    %p258 = scmp.eq.s32.totalorder %s23, 0
    %p259 = por %p257, %p258
    %p260 = scmp.ne.s32.totalorder %s246, %s247
    %p261 = scmp.eq.s32.totalorder %s24, 1
    %p262 = por %p260, %p261
    %p264 = scmp.ne.s32.totalorder %s247, %s263
    %p265 = scmp.eq.s32.totalorder %s24, 0
    %p266 = por %p264, %p265
    %p267 = scmp.le.s32.totalorder 1, %s18
    %p268 = scmp.lt.s32.totalorder %s18, 3
    %p269 = pnand %p267, %p268
    %p270 = pneg %p269
    // Predicated region
    $region9: #{depthwise_forward.1} parent=5 // pred_check
      _
    $region10: #{depthwise_forward.1} parent=5 // pred_check_branch
      %272 = sbr.rel (%p269) target = $region12
    $region11: #{depthwise_forward.1} parent=5 // pred_region
      %s273 = ssub.s32 %s18, 1
      // Predicated region
      $region13: #{depthwise_forward.1} parent=11 // pred_check
        %p274 = pneg %p65
      $region14: #{depthwise_forward.1} parent=11 // pred_check_branch
        %276 = sbr.rel (%p274) target = $region16
      $region15: #{depthwise_forward.1} parent=11 // pred_region
        _
      $region16: #{depthwise_forward.1} parent=11 // pred_fallthru
        _
      // Predicated region
      $region17: #{depthwise_forward.1} parent=11 // pred_check
        %p277 = pneg %p86
      $region18: #{depthwise_forward.1} parent=11 // pred_check_branch
        %279 = sbr.rel (%p277) target = $region20
      $region19: #{depthwise_forward.1} parent=11 // pred_region
        _
      $region20: #{depthwise_forward.1} parent=11 // pred_fallthru
        _
      // Predicated region
      $region21: #{depthwise_forward.1} parent=11 // pred_check
        %p280 = pneg %p107
      $region22: #{depthwise_forward.1} parent=11 // pred_check_branch
        %282 = sbr.rel (%p280) target = $region24
      $region23: #{depthwise_forward.1} parent=11 // pred_region
        _
      $region24: #{depthwise_forward.1} parent=11 // pred_fallthru
        _
      // Predicated region
      $region25: #{depthwise_forward.1} parent=11 // pred_check
        %p283 = pneg %p128
      $region26: #{depthwise_forward.1} parent=11 // pred_check_branch
        %285 = sbr.rel (%p283) target = $region28
      $region27: #{depthwise_forward.1} parent=11 // pred_region
        _
      $region28: #{depthwise_forward.1} parent=11 // pred_fallthru
        _
      // Predicated region
      $region29: #{depthwise_forward.1} parent=11 // pred_check
        %p286 = pneg %p149
      $region30: #{depthwise_forward.1} parent=11 // pred_check_branch
        %288 = sbr.rel (%p286) target = $region32
      $region31: #{depthwise_forward.1} parent=11 // pred_region
        _
      $region32: #{depthwise_forward.1} parent=11 // pred_fallthru
        _
      // Predicated region
      $region33: #{depthwise_forward.1} parent=11 // pred_check
        %p289 = pneg %p170
      $region34: #{depthwise_forward.1} parent=11 // pred_check_branch
        %291 = sbr.rel (%p289) target = $region36
      $region35: #{depthwise_forward.1} parent=11 // pred_region
        _
      $region36: #{depthwise_forward.1} parent=11 // pred_fallthru
        _
      // Predicated region
      $region37: #{depthwise_forward.1} parent=11 // pred_check
        %p292 = pneg %p191
      $region38: #{depthwise_forward.1} parent=11 // pred_check_branch
        %294 = sbr.rel (%p292) target = $region40
      $region39: #{depthwise_forward.1} parent=11 // pred_region
        _
      $region40: #{depthwise_forward.1} parent=11 // pred_fallthru
        _
      // Predicated region
      $region41: #{depthwise_forward.1} parent=11 // pred_check
        %p295 = pneg %p212
      $region42: #{depthwise_forward.1} parent=11 // pred_check_branch
        %297 = sbr.rel (%p295) target = $region44
      $region43: #{depthwise_forward.1} parent=11 // pred_region
        _
      $region44: #{depthwise_forward.1} parent=11 // pred_fallthru
        _
      // Predicated region
      $region45: #{depthwise_forward.1} parent=11 // pred_check
        %p298 = pneg %p233
      $region46: #{depthwise_forward.1} parent=11 // pred_check_branch
        %300 = sbr.rel (%p298) target = $region48
      $region47: #{depthwise_forward.1} parent=11 // pred_region
        _
      $region48: #{depthwise_forward.1} parent=11 // pred_fallthru
        _
    $region12: #{depthwise_forward.1} parent=5 // pred_fallthru
      _
    %p301 = scmp.lt.s32.totalorder %s18, 2
    // Predicated region
    $region49: #{depthwise_forward.1} parent=5 // pred_check
      %p302 = pneg %p301
    $region50: #{depthwise_forward.1} parent=5 // pred_check_branch
      %304 = sbr.rel (%p302) target = $region52
    $region51: #{depthwise_forward.1} parent=5 // pred_region
      // Predicated region
      $region53: #{depthwise_forward.1} parent=51 // pred_check
        %p305 = pneg %p38
      $region54: #{depthwise_forward.1} parent=51 // pred_check_branch
        %307 = sbr.rel (%p305) target = $region56
      $region55: #{depthwise_forward.1} parent=51 // pred_region
        %p308 = scmp.lt.s32.totalorder %s18, 1
        %s309 = scalar_select %p308, %s18, 1
        %s310 = smul.addr %s309, 6
        %s311 = smul.addr %s310, 8
        %s312 = scalar_lea.vmem %s0, %s311
      $region56: #{depthwise_forward.1} parent=51 // pred_fallthru
        _
    $region52: #{depthwise_forward.1} parent=5 // pred_fallthru
      _
    %p313 = scmp.le.s32.totalorder 1, %s18
    %p314 = scmp.lt.s32.totalorder %s18, 3
    %p315 = pnand %p313, %p314
    %p316 = pneg %p315
    // Predicated region
    $region57: #{depthwise_forward.1} parent=5 // pred_check
      _
    $region58: #{depthwise_forward.1} parent=5 // pred_check_branch
      %318 = sbr.rel (%p315) target = $region60
    $region59: #{depthwise_forward.1} parent=5 // pred_region
      %s319 = ssub.s32 %s18, 1
      %p320 = scmp.lt.s32.totalorder %s23, 1
      %s321 = scalar_select %p320, %s23, 1
      %s322 = smul.addr %s321, 6
      %s323 = smul.addr %s322, 8
      %s324 = scalar_lea.vmem %s0, %s323
      %p325 = pneg %p44
      %p326 = pneg %p41
      %p327 = pneg %p65
      %p328 = pneg %p62
      %p329 = pneg %p86
      %p330 = pneg %p83
      %p331 = pneg %p107
      %p332 = pneg %p104
      %p333 = pneg %p128
      %p334 = pneg %p125
      %p335 = pneg %p149
      %p336 = pneg %p146
      %p337 = pneg %p170
      %p338 = pneg %p167
      %p339 = pneg %p191
      %p340 = pneg %p188
      %p341 = pneg %p212
      %p342 = pneg %p209
      %p343 = pneg %p233
      %p344 = pneg %p230
      %p345 = pneg %p259
      %p346 = pneg %p256
      %p347 = scmp.lt.s32.totalorder %s23, 1
      %s348 = scalar_select %p347, %s23, 1
      %s349 = smul.addr %s348, 96
      %s350 = smul.addr %s349, 8
      %s351 = scalar_lea.vmem %s10, %s350
      %p352 = scmp.lt.s32.totalorder %s23, 1
      %s353 = scalar_select %p352, %s23, 1
      %s354 = smul.addr %s353, 6
      %s355 = smul.addr %s354, 8
      %s356 = scalar_lea.vmem %s0, %s355
      %p357 = scmp.lt.s32.totalorder %s23, 1
      %s358 = scalar_select %p357, %s23, 1
      %s359 = smul.addr %s358, 96
      %s360 = smul.addr %s359, 8
      %s361 = scalar_lea.vmem %s10, %s360
      %v362 = vld [vmem:[%s356] sm:$0xff]
      %v363 = vld [vmem:[%s356 + $0x8] sm:$0xff]
      %v364 = vld [vmem:[%s356 + $0x10] sm:$0xff]
      %v365 = vld [vmem:[%s356 + $0x18] sm:$0xff]
      %v366 = vld [vmem:[%s356 + $0x20] sm:$0xff]
      %v367 = vld [vmem:[%s356 + $0x28] sm:$0xff]
      %v368 = vld [vmem:[%s1] sm:$0xff]
      %v369 = vld [vmem:[%s1 + $0x8] sm:$0xff]
      %371 = vset.pattern.permute.xlu0 0
      %372 = vperm.xlu0 %371, %v368
      %v373 = vpop.permute.xlu0 %372
      %376 = vset.pattern.permute.xlu0 0
      %377 = vperm.xlu0 %376, %v369
      %v378 = vpop.permute.xlu0 %377
      %v380 = vmul.f32 %v362, %v373
      %v381 = vmul.f32 %v363, %v373
      %v382 = vmul.f32 %v364, %v373
      %v383 = vmul.f32 %v365, %v378
      %v384 = vmul.f32 %v366, %v378
      %v385 = vmul.f32 %v367, %v378
      %386 = vset.pattern.permute.xlu0 1
      %387 = vperm.xlu0 %386, %v368
      %v388 = vpop.permute.xlu0 %387
      %390 = vset.pattern.permute.xlu0 1
      %391 = vperm.xlu0 %390, %v369
      %v392 = vpop.permute.xlu0 %391
      %v394 = vmul.f32 %v362, %v388
      %v395 = vmul.f32 %v363, %v388
      %v396 = vmul.f32 %v364, %v388
      %v397 = vmul.f32 %v365, %v392
      %v398 = vmul.f32 %v366, %v392
      %v399 = vmul.f32 %v367, %v392
      %406 = vrot.lane.b32.xlu0 %v394, 127
      %v407 = vpop.permute.xlu0 %406
      %408 = vrot.lane.b32.xlu0 %v395, 127
      %v409 = vpop.permute.xlu0 %408
      %410 = vrot.lane.b32.xlu0 %v396, 127
      %v411 = vpop.permute.xlu0 %410
      %412 = vrot.lane.b32.xlu0 %v397, 127
      %v413 = vpop.permute.xlu0 %412
      %414 = vrot.lane.b32.xlu0 %v398, 127
      %v415 = vpop.permute.xlu0 %414
      %416 = vrot.lane.b32.xlu0 %v399, 127
      %v417 = vpop.permute.xlu0 %416
      %vm418 = vcmask 1039360
      %v419 = vsel %vm418, %v407, %v409
      %v420 = vsel %vm418, %v409, %v411
      %v421 = vsel %vm418, %v413, %v415
      %v422 = vsel %vm418, %v415, %v417
      %v429 = vadd.f32 %v380, %v419
      %v430 = vadd.f32 %v381, %v420
      %v431 = vadd.f32 %v382, %v411
      %v432 = vadd.f32 %v383, %v421
      %v433 = vadd.f32 %v384, %v422
      %v434 = vadd.f32 %v385, %v417
      %435 = vset.pattern.permute.xlu0 2
      %436 = vperm.xlu0 %435, %v368
      %v437 = vpop.permute.xlu0 %436
      %439 = vset.pattern.permute.xlu0 2
      %440 = vperm.xlu0 %439, %v369
      %v441 = vpop.permute.xlu0 %440
      %v443 = vmul.f32 %v362, %v437
      %v444 = vmul.f32 %v363, %v437
      %v445 = vmul.f32 %v364, %v437
      %v446 = vmul.f32 %v365, %v441
      %v447 = vmul.f32 %v366, %v441
      %v448 = vmul.f32 %v367, %v441
      %455 = vrot.lane.b32.xlu0 %v443, 126
      %v456 = vpop.permute.xlu0 %455
      %457 = vrot.lane.b32.xlu0 %v444, 126
      %v458 = vpop.permute.xlu0 %457
      %459 = vrot.lane.b32.xlu0 %v445, 126
      %v460 = vpop.permute.xlu0 %459
      %461 = vrot.lane.b32.xlu0 %v446, 126
      %v462 = vpop.permute.xlu0 %461
      %463 = vrot.lane.b32.xlu0 %v447, 126
      %v464 = vpop.permute.xlu0 %463
      %465 = vrot.lane.b32.xlu0 %v448, 126
      %v466 = vpop.permute.xlu0 %465
      %vm467 = vcmask 1031168
      %v468 = vsel %vm467, %v456, %v458
      %v469 = vsel %vm467, %v458, %v460
      %v470 = vsel %vm467, %v462, %v464
      %v471 = vsel %vm467, %v464, %v466
      %v478 = vadd.f32 %v429, %v468
      %v479 = vadd.f32 %v430, %v469
      %v480 = vadd.f32 %v431, %v460
      %v481 = vadd.f32 %v432, %v470
      %v482 = vadd.f32 %v433, %v471
      %v483 = vadd.f32 %v434, %v466
      %484 = vset.pattern.permute.xlu0 3
      %485 = vperm.xlu0 %484, %v368
      %v486 = vpop.permute.xlu0 %485
      %488 = vset.pattern.permute.xlu0 3
      %489 = vperm.xlu0 %488, %v369
      %v490 = vpop.permute.xlu0 %489
      %v492 = vmul.f32 %v362, %v486
      %v493 = vmul.f32 %v363, %v486
      %v494 = vmul.f32 %v364, %v486
      %v495 = vmul.f32 %v365, %v490
      %v496 = vmul.f32 %v366, %v490
      %v497 = vmul.f32 %v367, %v490
      %504 = vrot.lane.b32.xlu0 %v492, 110
      %v505 = vpop.permute.xlu0 %504
      %506 = vrot.lane.b32.xlu0 %v493, 110
      %v507 = vpop.permute.xlu0 %506
      %508 = vrot.lane.b32.xlu0 %v494, 110
      %v509 = vpop.permute.xlu0 %508
      %510 = vrot.lane.b32.xlu0 %v495, 110
      %v511 = vpop.permute.xlu0 %510
      %512 = vrot.lane.b32.xlu0 %v496, 110
      %v513 = vpop.permute.xlu0 %512
      %514 = vrot.lane.b32.xlu0 %v497, 110
      %v515 = vpop.permute.xlu0 %514
      %vm516 = vcmask 900096
      %v517 = vsel %vm516, %v505, %v507
      %v518 = vsel %vm516, %v507, %v509
      %v519 = vsel %vm516, %v511, %v513
      %v520 = vsel %vm516, %v513, %v515
      %v527 = vadd.f32 %v478, %v517
      %v528 = vadd.f32 %v479, %v518
      %v529 = vadd.f32 %v480, %v509
      %v530 = vadd.f32 %v481, %v519
      %v531 = vadd.f32 %v482, %v520
      %v532 = vadd.f32 %v483, %v515
      %533 = vset.pattern.permute.xlu0 4
      %534 = vperm.xlu0 %533, %v368
      %v535 = vpop.permute.xlu0 %534
      %537 = vset.pattern.permute.xlu0 4
      %538 = vperm.xlu0 %537, %v369
      %v539 = vpop.permute.xlu0 %538
      %v541 = vmul.f32 %v362, %v535
      %v542 = vmul.f32 %v363, %v535
      %v543 = vmul.f32 %v364, %v535
      %v544 = vmul.f32 %v365, %v539
      %v545 = vmul.f32 %v366, %v539
      %v546 = vmul.f32 %v367, %v539
      %553 = vrot.lane.b32.xlu0 %v541, 109
      %v554 = vpop.permute.xlu0 %553
      %555 = vrot.lane.b32.xlu0 %v542, 109
      %v556 = vpop.permute.xlu0 %555
      %557 = vrot.lane.b32.xlu0 %v543, 109
      %v558 = vpop.permute.xlu0 %557
      %559 = vrot.lane.b32.xlu0 %v544, 109
      %v560 = vpop.permute.xlu0 %559
      %561 = vrot.lane.b32.xlu0 %v545, 109
      %v562 = vpop.permute.xlu0 %561
      %563 = vrot.lane.b32.xlu0 %v546, 109
      %v564 = vpop.permute.xlu0 %563
      %vm565 = vcmask 891904
      %v566 = vsel %vm565, %v554, %v556
      %v567 = vsel %vm565, %v556, %v558
      %v568 = vsel %vm565, %v560, %v562
      %v569 = vsel %vm565, %v562, %v564
      %v576 = vadd.f32 %v527, %v566
      %v577 = vadd.f32 %v528, %v567
      %v578 = vadd.f32 %v529, %v558
      %v579 = vadd.f32 %v530, %v568
      %v580 = vadd.f32 %v531, %v569
      %v581 = vadd.f32 %v532, %v564
      %582 = vset.pattern.permute.xlu0 5
      %583 = vperm.xlu0 %582, %v368
      %v584 = vpop.permute.xlu0 %583
      %586 = vset.pattern.permute.xlu0 5
      %587 = vperm.xlu0 %586, %v369
      %v588 = vpop.permute.xlu0 %587
      %v590 = vmul.f32 %v362, %v584
      %v591 = vmul.f32 %v363, %v584
      %v592 = vmul.f32 %v364, %v584
      %v593 = vmul.f32 %v365, %v588
      %v594 = vmul.f32 %v366, %v588
      %v595 = vmul.f32 %v367, %v588
      %602 = vrot.lane.b32.xlu0 %v590, 108
      %v603 = vpop.permute.xlu0 %602
      %604 = vrot.lane.b32.xlu0 %v591, 108
      %v605 = vpop.permute.xlu0 %604
      %606 = vrot.lane.b32.xlu0 %v592, 108
      %v607 = vpop.permute.xlu0 %606
      %608 = vrot.lane.b32.xlu0 %v593, 108
      %v609 = vpop.permute.xlu0 %608
      %610 = vrot.lane.b32.xlu0 %v594, 108
      %v611 = vpop.permute.xlu0 %610
      %612 = vrot.lane.b32.xlu0 %v595, 108
      %v613 = vpop.permute.xlu0 %612
      %vm614 = vcmask 883712
      %v615 = vsel %vm614, %v603, %v605
      %v616 = vsel %vm614, %v605, %v607
      %v617 = vsel %vm614, %v609, %v611
      %v618 = vsel %vm614, %v611, %v613
      %v625 = vadd.f32 %v576, %v615
      %v626 = vadd.f32 %v577, %v616
      %v627 = vadd.f32 %v578, %v607
      %v628 = vadd.f32 %v579, %v617
      %v629 = vadd.f32 %v580, %v618
      %v630 = vadd.f32 %v581, %v613
      %631 = vset.pattern.permute.xlu0 6
      %632 = vperm.xlu0 %631, %v368
      %v633 = vpop.permute.xlu0 %632
      %635 = vset.pattern.permute.xlu0 6
      %636 = vperm.xlu0 %635, %v369
      %v637 = vpop.permute.xlu0 %636
      %v639 = vmul.f32 %v362, %v633
      %v640 = vmul.f32 %v363, %v633
      %v641 = vmul.f32 %v364, %v633
      %v642 = vmul.f32 %v365, %v637
      %v643 = vmul.f32 %v366, %v637
      %v644 = vmul.f32 %v367, %v637
      %651 = vrot.lane.b32.xlu0 %v639, 92
      %v652 = vpop.permute.xlu0 %651
      %653 = vrot.lane.b32.xlu0 %v640, 92
      %v654 = vpop.permute.xlu0 %653
      %655 = vrot.lane.b32.xlu0 %v641, 92
      %v656 = vpop.permute.xlu0 %655
      %657 = vrot.lane.b32.xlu0 %v642, 92
      %v658 = vpop.permute.xlu0 %657
      %659 = vrot.lane.b32.xlu0 %v643, 92
      %v660 = vpop.permute.xlu0 %659
      %661 = vrot.lane.b32.xlu0 %v644, 92
      %v662 = vpop.permute.xlu0 %661
      %vm663 = vcmask 752640
      %v664 = vsel %vm663, %v652, %v654
      %v665 = vsel %vm663, %v654, %v656
      %v666 = vsel %vm663, %v658, %v660
      %v667 = vsel %vm663, %v660, %v662
      %v674 = vadd.f32 %v625, %v664
      %v675 = vadd.f32 %v626, %v665
      %v676 = vadd.f32 %v627, %v656
      %v677 = vadd.f32 %v628, %v666
      %v678 = vadd.f32 %v629, %v667
      %v679 = vadd.f32 %v630, %v662
      %680 = vset.pattern.permute.xlu0 7
      %681 = vperm.xlu0 %680, %v368
      %v682 = vpop.permute.xlu0 %681
      %684 = vset.pattern.permute.xlu0 7
      %685 = vperm.xlu0 %684, %v369
      %v686 = vpop.permute.xlu0 %685
      %v688 = vmul.f32 %v362, %v682
      %v689 = vmul.f32 %v363, %v682
      %v690 = vmul.f32 %v364, %v682
      %v691 = vmul.f32 %v365, %v686
      %v692 = vmul.f32 %v366, %v686
      %v693 = vmul.f32 %v367, %v686
      %700 = vrot.lane.b32.xlu0 %v688, 91
      %v701 = vpop.permute.xlu0 %700
      %702 = vrot.lane.b32.xlu0 %v689, 91
      %v703 = vpop.permute.xlu0 %702
      %704 = vrot.lane.b32.xlu0 %v690, 91
      %v705 = vpop.permute.xlu0 %704
      %706 = vrot.lane.b32.xlu0 %v691, 91
      %v707 = vpop.permute.xlu0 %706
      %708 = vrot.lane.b32.xlu0 %v692, 91
      %v709 = vpop.permute.xlu0 %708
      %710 = vrot.lane.b32.xlu0 %v693, 91
      %v711 = vpop.permute.xlu0 %710
      %vm712 = vcmask 744448
      %v713 = vsel %vm712, %v701, %v703
      %v714 = vsel %vm712, %v703, %v705
      %v715 = vsel %vm712, %v707, %v709
      %v716 = vsel %vm712, %v709, %v711
      %v723 = vadd.f32 %v674, %v713
      %v724 = vadd.f32 %v675, %v714
      %v725 = vadd.f32 %v676, %v705
      %v726 = vadd.f32 %v677, %v715
      %v727 = vadd.f32 %v678, %v716
      %v728 = vadd.f32 %v679, %v711
      %729 = vset.pattern.permute.xlu0 8
      %730 = vperm.xlu0 %729, %v368
      %v731 = vpop.permute.xlu0 %730
      %733 = vset.pattern.permute.xlu0 8
      %734 = vperm.xlu0 %733, %v369
      %v735 = vpop.permute.xlu0 %734
      %v737 = vmul.f32 %v362, %v731
      %v738 = vmul.f32 %v363, %v731
      %v739 = vmul.f32 %v364, %v731
      %v740 = vmul.f32 %v365, %v735
      %v741 = vmul.f32 %v366, %v735
      %v742 = vmul.f32 %v367, %v735
      %749 = vrot.lane.b32.xlu0 %v737, 90
      %v750 = vpop.permute.xlu0 %749
      %751 = vrot.lane.b32.xlu0 %v738, 90
      %v752 = vpop.permute.xlu0 %751
      %753 = vrot.lane.b32.xlu0 %v739, 90
      %v754 = vpop.permute.xlu0 %753
      %755 = vrot.lane.b32.xlu0 %v740, 90
      %v756 = vpop.permute.xlu0 %755
      %757 = vrot.lane.b32.xlu0 %v741, 90
      %v758 = vpop.permute.xlu0 %757
      %759 = vrot.lane.b32.xlu0 %v742, 90
      %v760 = vpop.permute.xlu0 %759
      %vm761 = vcmask 736256
      %v762 = vsel %vm761, %v750, %v752
      %v763 = vsel %vm761, %v752, %v754
      %v764 = vsel %vm761, %v756, %v758
      %v765 = vsel %vm761, %v758, %v760
      %v772 = vadd.f32 %v723, %v762
      %v773 = vadd.f32 %v724, %v763
      %v774 = vadd.f32 %v725, %v754
      %v775 = vadd.f32 %v726, %v764
      %v776 = vadd.f32 %v727, %v765
      %v777 = vadd.f32 %v728, %v760
      %v778 = vld [vmem:[%s2] sm:$0xff]
      %v779 = vld [vmem:[%s2 + $0x8] sm:$0xff]
      %781 = vset.pattern.permute.xlu0 0
      %782 = vperm.xlu0 %781, %v778
      %v783 = vpop.permute.xlu0 %782
      %786 = vset.pattern.permute.xlu0 0
      %787 = vperm.xlu0 %786, %v779
      %v788 = vpop.permute.xlu0 %787
      %v790 = vadd.f32 %v772, %v783
      %v791 = vadd.f32 %v773, %v783
      %v792 = vadd.f32 %v774, %v783
      %v793 = vadd.f32 %v775, %v788
      %v794 = vadd.f32 %v776, %v788
      %v795 = vadd.f32 %v777, %v788
      %v796 = vmax.f32 %v790, 0.0
      %v797 = vmax.f32 %v791, 0.0
      %v798 = vmax.f32 %v792, 0.0
      %v799 = vmax.f32 %v793, 0.0
      %v800 = vmax.f32 %v794, 0.0
      %v801 = vmax.f32 %v795, 0.0
      %v802 = vmin.f32 %v796, 6.0
      %v803 = vmin.f32 %v797, 6.0
      %v804 = vmin.f32 %v798, 6.0
      %v805 = vmin.f32 %v799, 6.0
      %v806 = vmin.f32 %v800, 6.0
      %v807 = vmin.f32 %v801, 6.0
      %v808 = vld [vmem:[%s5] sm:$0x7]
      %v810 = vlaneseq
      %v811 = vshrl.u32 %v810, 7
      %v812 = vsub.s32 0, %v811
      %v813 = vrot.slane %v808, %v812
      %v814 = vlaneseq
      %v815 = vshrl.u32 %v814, 7
      %v816 = vsub.s32 1, %v815
      %v817 = vrot.slane %v808, %v816
      %v818 = vlaneseq
      %v819 = vshrl.u32 %v818, 7
      %v820 = vsub.s32 2, %v819
      %v821 = vrot.slane %v808, %v820
      %v825 = vmul.f32 %v802, %v813
      %v826 = vmul.f32 %v803, %v817
      %v827 = vmul.f32 %v804, %v821
      %v828 = vmul.f32 %v805, %v813
      %v829 = vmul.f32 %v806, %v817
      %v830 = vmul.f32 %v807, %v821
      %v831 = vld [vmem:[%s3] sm:$0xff]
      %v832 = vld [vmem:[%s3 + $0x8] sm:$0xff]
      %v833 = vld [vmem:[%s3 + $0x10] sm:$0xff]
      %v834 = vld [vmem:[%s3 + $0x18] sm:$0xff]
      %v835 = vld [vmem:[%s3 + $0x20] sm:$0xff]
      %v836 = vld [vmem:[%s3 + $0x28] sm:$0xff]
      %v837 = vld [vmem:[%s3 + $0x30] sm:$0xff]
      %v838 = vld [vmem:[%s3 + $0x38] sm:$0xff]
      %v839 = vld [vmem:[%s3 + $0x40] sm:$0xff]
      %v840 = vld [vmem:[%s3 + $0x48] sm:$0xff]
      %v841 = vld [vmem:[%s3 + $0x50] sm:$0xff]
      %v842 = vld [vmem:[%s3 + $0x58] sm:$0xff]
      %v843 = vld [vmem:[%s3 + $0x60] sm:$0xff]
      %v844 = vld [vmem:[%s3 + $0x68] sm:$0xff]
      %v845 = vld [vmem:[%s3 + $0x70] sm:$0xff]
      %v846 = vld [vmem:[%s3 + $0x78] sm:$0xff]
      %v847 = vld [vmem:[%s3 + $0x80] sm:$0xff]
      %v848 = vld [vmem:[%s3 + $0x88] sm:$0xff]
      %v849 = vld [vmem:[%s3 + $0x90] sm:$0xff]
      %v850 = vld [vmem:[%s3 + $0x98] sm:$0xff]
      %v851 = vld [vmem:[%s3 + $0xa0] sm:$0xff]
      %v852 = vld [vmem:[%s3 + $0xa8] sm:$0xff]
      %v853 = vld [vmem:[%s3 + $0xb0] sm:$0xff]
      %v854 = vld [vmem:[%s3 + $0xb8] sm:$0xff]
      %v855 = vld [vmem:[%s3 + $0xc0] sm:$0xff]
      %v856 = vld [vmem:[%s3 + $0xc8] sm:$0xff]
      %v857 = vld [vmem:[%s3 + $0xd0] sm:$0xff]
      %v858 = vld [vmem:[%s3 + $0xd8] sm:$0xff]
      %v859 = vld [vmem:[%s3 + $0xe0] sm:$0xff]
      %v860 = vld [vmem:[%s3 + $0xe8] sm:$0xff]
      %v861 = vld [vmem:[%s3 + $0xf0] sm:$0xff]
      %v862 = vld [vmem:[%s3 + $0xf8] sm:$0xff]
      %v863 = vld [vmem:[%s4] sm:$0xff]
      %v864 = vld [vmem:[%s4 + $0x8] sm:$0xff]
      %v865 = vld [vmem:[%s4 + $0x10] sm:$0xff]
      %v866 = vld [vmem:[%s4 + $0x18] sm:$0xff]
      %v867 = vld [vmem:[%s4 + $0x20] sm:$0xff]
      %v868 = vld [vmem:[%s4 + $0x28] sm:$0xff]
      %v869 = vld [vmem:[%s4 + $0x30] sm:$0xff]
      %v870 = vld [vmem:[%s4 + $0x38] sm:$0xff]
      %v871 = vld [vmem:[%s4 + $0x40] sm:$0xff]
      %v872 = vld [vmem:[%s4 + $0x48] sm:$0xff]
      %v873 = vld [vmem:[%s4 + $0x50] sm:$0xff]
      %v874 = vld [vmem:[%s4 + $0x58] sm:$0xff]
      %v875 = vld [vmem:[%s4 + $0x60] sm:$0xff]
      %v876 = vld [vmem:[%s4 + $0x68] sm:$0xff]
      %v877 = vld [vmem:[%s4 + $0x70] sm:$0xff]
      %v878 = vld [vmem:[%s4 + $0x78] sm:$0xff]
      %v879 = vld [vmem:[%s4 + $0x80] sm:$0xff]
      %v880 = vld [vmem:[%s4 + $0x88] sm:$0xff]
      %v881 = vld [vmem:[%s4 + $0x90] sm:$0xff]
      %v882 = vld [vmem:[%s4 + $0x98] sm:$0xff]
      %v883 = vld [vmem:[%s4 + $0xa0] sm:$0xff]
      %v884 = vld [vmem:[%s4 + $0xa8] sm:$0xff]
      %v885 = vld [vmem:[%s4 + $0xb0] sm:$0xff]
      %v886 = vld [vmem:[%s4 + $0xb8] sm:$0xff]
      %v887 = vld [vmem:[%s4 + $0xc0] sm:$0xff]
      %v888 = vld [vmem:[%s4 + $0xc8] sm:$0xff]
      %v889 = vld [vmem:[%s4 + $0xd0] sm:$0xff]
      %v890 = vld [vmem:[%s4 + $0xd8] sm:$0xff]
      %v891 = vld [vmem:[%s4 + $0xe0] sm:$0xff]
      %v892 = vld [vmem:[%s4 + $0xe8] sm:$0xff]
      %v893 = vld [vmem:[%s4 + $0xf0] sm:$0xff]
      %v894 = vld [vmem:[%s4 + $0xf8] sm:$0xff]
      %896 = vset.pattern.permute.xlu0 0
      %897 = vperm.xlu0 %896, %v863
      %v898 = vpop.permute.xlu0 %897
      %901 = vset.pattern.permute.xlu0 0
      %902 = vperm.xlu0 %901, %v864
      %v903 = vpop.permute.xlu0 %902
      %906 = vset.pattern.permute.xlu0 0
      %907 = vperm.xlu0 %906, %v865
      %v908 = vpop.permute.xlu0 %907
      %911 = vset.pattern.permute.xlu0 0
      %912 = vperm.xlu0 %911, %v866
      %v913 = vpop.permute.xlu0 %912
      %916 = vset.pattern.permute.xlu0 0
      %917 = vperm.xlu0 %916, %v867
      %v918 = vpop.permute.xlu0 %917
      %921 = vset.pattern.permute.xlu0 0
      %922 = vperm.xlu0 %921, %v868
      %v923 = vpop.permute.xlu0 %922
      %926 = vset.pattern.permute.xlu0 0
      %927 = vperm.xlu0 %926, %v869
      %v928 = vpop.permute.xlu0 %927
      %931 = vset.pattern.permute.xlu0 0
      %932 = vperm.xlu0 %931, %v870
      %v933 = vpop.permute.xlu0 %932
      %936 = vset.pattern.permute.xlu0 0
      %937 = vperm.xlu0 %936, %v871
      %v938 = vpop.permute.xlu0 %937
      %941 = vset.pattern.permute.xlu0 0
      %942 = vperm.xlu0 %941, %v872
      %v943 = vpop.permute.xlu0 %942
      %946 = vset.pattern.permute.xlu0 0
      %947 = vperm.xlu0 %946, %v873
      %v948 = vpop.permute.xlu0 %947
      %951 = vset.pattern.permute.xlu0 0
      %952 = vperm.xlu0 %951, %v874
      %v953 = vpop.permute.xlu0 %952
      %956 = vset.pattern.permute.xlu0 0
      %957 = vperm.xlu0 %956, %v875
      %v958 = vpop.permute.xlu0 %957
      %961 = vset.pattern.permute.xlu0 0
      %962 = vperm.xlu0 %961, %v876
      %v963 = vpop.permute.xlu0 %962
      %966 = vset.pattern.permute.xlu0 0
      %967 = vperm.xlu0 %966, %v877
      %v968 = vpop.permute.xlu0 %967
      %971 = vset.pattern.permute.xlu0 0
      %972 = vperm.xlu0 %971, %v878
      %v973 = vpop.permute.xlu0 %972
      %976 = vset.pattern.permute.xlu0 0
      %977 = vperm.xlu0 %976, %v879
      %v978 = vpop.permute.xlu0 %977
      %981 = vset.pattern.permute.xlu0 0
      %982 = vperm.xlu0 %981, %v880
      %v983 = vpop.permute.xlu0 %982
      %986 = vset.pattern.permute.xlu0 0
      %987 = vperm.xlu0 %986, %v881
      %v988 = vpop.permute.xlu0 %987
      %991 = vset.pattern.permute.xlu0 0
      %992 = vperm.xlu0 %991, %v882
      %v993 = vpop.permute.xlu0 %992
      %996 = vset.pattern.permute.xlu0 0
      %997 = vperm.xlu0 %996, %v883
      %v998 = vpop.permute.xlu0 %997
      %1001 = vset.pattern.permute.xlu0 0
      %1002 = vperm.xlu0 %1001, %v884
      %v1003 = vpop.permute.xlu0 %1002
      %1006 = vset.pattern.permute.xlu0 0
      %1007 = vperm.xlu0 %1006, %v885
      %v1008 = vpop.permute.xlu0 %1007
      %1011 = vset.pattern.permute.xlu0 0
      %1012 = vperm.xlu0 %1011, %v886
      %v1013 = vpop.permute.xlu0 %1012
      %1016 = vset.pattern.permute.xlu0 0
      %1017 = vperm.xlu0 %1016, %v887
      %v1018 = vpop.permute.xlu0 %1017
      %1021 = vset.pattern.permute.xlu0 0
      %1022 = vperm.xlu0 %1021, %v888
      %v1023 = vpop.permute.xlu0 %1022
      %1026 = vset.pattern.permute.xlu0 0
      %1027 = vperm.xlu0 %1026, %v889
      %v1028 = vpop.permute.xlu0 %1027
      %1031 = vset.pattern.permute.xlu0 0
      %1032 = vperm.xlu0 %1031, %v890
      %v1033 = vpop.permute.xlu0 %1032
      %1036 = vset.pattern.permute.xlu0 0
      %1037 = vperm.xlu0 %1036, %v891
      %v1038 = vpop.permute.xlu0 %1037
      %1041 = vset.pattern.permute.xlu0 0
      %1042 = vperm.xlu0 %1041, %v892
      %v1043 = vpop.permute.xlu0 %1042
      %1046 = vset.pattern.permute.xlu0 0
      %1047 = vperm.xlu0 %1046, %v893
      %v1048 = vpop.permute.xlu0 %1047
      %1051 = vset.pattern.permute.xlu0 0
      %1052 = vperm.xlu0 %1051, %v894
      %v1053 = vpop.permute.xlu0 %1052
      %vm1055 = vcmask 130048
      %v1057 = vsel %vm1055, %v831, 0
      %v1060 = vsel %vm1055, %v832, 0
      %v1063 = vsel %vm1055, %v833, 0
      %v1066 = vsel %vm1055, %v834, 0
      %v1069 = vsel %vm1055, %v835, 0
      %v1072 = vsel %vm1055, %v836, 0
      %v1075 = vsel %vm1055, %v837, 0
      %v1078 = vsel %vm1055, %v838, 0
      %v1081 = vsel %vm1055, %v839, 0
      %v1084 = vsel %vm1055, %v840, 0
      %v1087 = vsel %vm1055, %v841, 0
      %v1090 = vsel %vm1055, %v842, 0
      %v1093 = vsel %vm1055, %v843, 0
      %v1096 = vsel %vm1055, %v844, 0
      %v1099 = vsel %vm1055, %v845, 0
      %v1102 = vsel %vm1055, %v846, 0
      %v1105 = vsel %vm1055, %v847, 0
      %v1108 = vsel %vm1055, %v848, 0
      %v1111 = vsel %vm1055, %v849, 0
      %v1114 = vsel %vm1055, %v850, 0
      %v1117 = vsel %vm1055, %v851, 0
      %v1120 = vsel %vm1055, %v852, 0
      %v1123 = vsel %vm1055, %v853, 0
      %v1126 = vsel %vm1055, %v854, 0
      %v1129 = vsel %vm1055, %v855, 0
      %v1132 = vsel %vm1055, %v856, 0
      %v1135 = vsel %vm1055, %v857, 0
      %v1138 = vsel %vm1055, %v858, 0
      %v1141 = vsel %vm1055, %v859, 0
      %v1144 = vsel %vm1055, %v860, 0
      %v1147 = vsel %vm1055, %v861, 0
      %v1150 = vsel %vm1055, %v862, 0
      %1152 = vmatprep.subr.mxu0 %v826
      %1153 = vmatpush1.msra.mxu0 %v825
      %1154 = vmatprep.subr.mxu0 %v829
      %1155 = vmatpush1.msra.mxu0 %v828
      %1156 = vmatprep.subr.mxu0 0.0
      %1157 = vmatpush1.msra.mxu0 0.0
      %1158 = vmatprep.subr.mxu0 0.0
      %1159 = vmatpush1.msra.mxu0 0.0
      %1160 = vmatprep.subr.mxu0 0.0
      %1161 = vmatpush1.msra.mxu0 0.0
      %1162 = vmatprep.subr.mxu0 0.0
      %1163 = vmatpush1.msra.mxu0 0.0
      %1164 = vmatprep.subr.mxu0 0.0
      %1165 = vmatpush1.msra.mxu0 0.0
      %1166 = vmatprep.subr.mxu0 0.0
      %1167 = vmatpush1.msra.mxu0 0.0
      %1168 = vmatprep.subr.mxu0 0.0
      %1169 = vmatpush1.msra.mxu0 0.0
      %1170 = vmatprep.subr.mxu0 0.0
      %1171 = vmatpush1.msra.mxu0 0.0
      %1172 = vmatprep.subr.mxu0 0.0
      %1173 = vmatpush1.msra.mxu0 0.0
      %1174 = vmatprep.subr.mxu0 0.0
      %1175 = vmatpush1.msra.mxu0 0.0
      %1176 = vmatprep.subr.mxu0 0.0
      %1177 = vmatpush1.msra.mxu0 0.0
      %1178 = vmatprep.subr.mxu0 0.0
      %1179 = vmatpush1.msra.mxu0 0.0
      %1180 = vmatprep.subr.mxu0 0.0
      %1181 = vmatpush1.msra.mxu0 0.0
      %1182 = vmatprep.subr.mxu0 0.0
      %1183 = vmatpush1.msra.mxu0 0.0
      %1184 = vmatprep.subr.mxu0 0.0
      %1185 = vmatpush1.msra.mxu0 0.0
      %1186 = vmatprep.subr.mxu0 0.0
      %1187 = vmatpush1.msra.mxu0 0.0
      %1188 = vmatprep.subr.mxu0 0.0
      %1189 = vmatpush1.msra.mxu0 0.0
      %1190 = vmatprep.subr.mxu0 0.0
      %1191 = vmatpush1.msra.mxu0 0.0
      %1192 = vmatprep.subr.mxu0 0.0
      %1193 = vmatpush1.msra.mxu0 0.0
      %1194 = vmatprep.subr.mxu0 0.0
      %1195 = vmatpush1.msra.mxu0 0.0
      %1196 = vmatprep.subr.mxu0 0.0
      %1197 = vmatpush1.msra.mxu0 0.0
      %1198 = vmatprep.subr.mxu0 0.0
      %1199 = vmatpush1.msra.mxu0 0.0
      %1200 = vmatprep.subr.mxu0 0.0
      %1201 = vmatpush1.msra.mxu0 0.0
      %1202 = vmatprep.subr.mxu0 0.0
      %1203 = vmatpush1.msra.mxu0 0.0
      %1204 = vmatprep.subr.mxu0 0.0
      %1205 = vmatpush1.msra.mxu0 0.0
      %1206 = vmatprep.subr.mxu0 0.0
      %1207 = vmatpush1.msra.mxu0 0.0
      %1208 = vmatprep.subr.mxu0 0.0
      %1209 = vmatpush1.msra.mxu0 0.0
      %1210 = vmatprep.subr.mxu0 0.0
      %1211 = vmatpush1.msra.mxu0 0.0
      %1212 = vmatprep.subr.mxu0 0.0
      %1213 = vmatpush1.msra.mxu0 0.0
      %1214 = vmatprep.subr.mxu0 0.0
      %1215 = vmatpush1.msra.mxu0 0.0
      %1216 = vmatprep.mubr.f32.mxu0 0.0
      %1217 = vmatmul.mubr.f32.gmra.mrb[0].mxu0 %v1057
      %v1218 = vpop.f32.mrb[0].mxu0
      %v1219 = vadd.f32 %v898, %v1218
      %v1220 = vpop.f32.mrb[0].mxu0
      %v1221 = vadd.f32 %v898, %v1220
      %1222 = vmatprep.mubr.f32.mxu0 0.0
      %1223 = vmatmul.mubr.f32.gmra.mrb[0].mxu0 %v1060
      %v1224 = vpop.f32.mrb[0].mxu0
      %v1225 = vadd.f32 %v903, %v1224
      %v1226 = vpop.f32.mrb[0].mxu0
      %v1227 = vadd.f32 %v903, %v1226
      %1228 = vmatprep.mubr.f32.mxu0 0.0
      %1229 = vmatmul.mubr.f32.gmra.mrb[0].mxu0 %v1063
      %v1230 = vpop.f32.mrb[0].mxu0
      %v1231 = vadd.f32 %v908, %v1230
      %v1232 = vpop.f32.mrb[0].mxu0
      %v1233 = vadd.f32 %v908, %v1232
      %1234 = vmatprep.mubr.f32.mxu0 0.0
      %1235 = vmatmul.mubr.f32.gmra.mrb[0].mxu0 %v1066
      %v1236 = vpop.f32.mrb[0].mxu0
      %v1237 = vadd.f32 %v913, %v1236
      %v1238 = vpop.f32.mrb[0].mxu0
      %v1239 = vadd.f32 %v913, %v1238
      %1240 = vmatprep.mubr.f32.mxu0 0.0
      %1241 = vmatmul.mubr.f32.gmra.mrb[0].mxu0 %v1069
      %v1242 = vpop.f32.mrb[0].mxu0
      %v1243 = vadd.f32 %v918, %v1242
      %v1244 = vpop.f32.mrb[0].mxu0
      %v1245 = vadd.f32 %v918, %v1244
      %1246 = vmatprep.mubr.f32.mxu0 0.0
      %1247 = vmatmul.mubr.f32.gmra.mrb[0].mxu0 %v1072
      %v1248 = vpop.f32.mrb[0].mxu0
      %v1249 = vadd.f32 %v923, %v1248
      %v1250 = vpop.f32.mrb[0].mxu0
      %v1251 = vadd.f32 %v923, %v1250
      %1252 = vmatprep.mubr.f32.mxu0 0.0
      %1253 = vmatmul.mubr.f32.gmra.mrb[0].mxu0 %v1075
      %v1254 = vpop.f32.mrb[0].mxu0
      %v1255 = vadd.f32 %v928, %v1254
      %v1256 = vpop.f32.mrb[0].mxu0
      %v1257 = vadd.f32 %v928, %v1256
      %1258 = vmatprep.mubr.f32.mxu0 0.0
      %1259 = vmatmul.mubr.f32.gmra.mrb[0].mxu0 %v1078
      %v1260 = vpop.f32.mrb[0].mxu0
      %v1261 = vadd.f32 %v933, %v1260
      %v1262 = vpop.f32.mrb[0].mxu0
      %v1263 = vadd.f32 %v933, %v1262
      %1264 = vmatprep.mubr.f32.mxu0 0.0
      %1265 = vmatmul.mubr.f32.gmra.mrb[0].mxu0 %v1081
      %v1266 = vpop.f32.mrb[0].mxu0
      %v1267 = vadd.f32 %v938, %v1266
      %v1268 = vpop.f32.mrb[0].mxu0
      %v1269 = vadd.f32 %v938, %v1268
      %1270 = vmatprep.mubr.f32.mxu0 0.0
      %1271 = vmatmul.mubr.f32.gmra.mrb[0].mxu0 %v1084
      %v1272 = vpop.f32.mrb[0].mxu0
      %v1273 = vadd.f32 %v943, %v1272
      %v1274 = vpop.f32.mrb[0].mxu0
      %v1275 = vadd.f32 %v943, %v1274
      %1276 = vmatprep.mubr.f32.mxu0 0.0
      %1277 = vmatmul.mubr.f32.gmra.mrb[0].mxu0 %v1087
      %v1278 = vpop.f32.mrb[0].mxu0
      %v1279 = vadd.f32 %v948, %v1278
      %v1280 = vpop.f32.mrb[0].mxu0
      %v1281 = vadd.f32 %v948, %v1280
      %1282 = vmatprep.mubr.f32.mxu0 0.0
      %1283 = vmatmul.mubr.f32.gmra.mrb[0].mxu0 %v1090
      %v1284 = vpop.f32.mrb[0].mxu0
      %v1285 = vadd.f32 %v953, %v1284
      %v1286 = vpop.f32.mrb[0].mxu0
      %v1287 = vadd.f32 %v953, %v1286
      %1288 = vmatprep.mubr.f32.mxu0 0.0
      %1289 = vmatmul.mubr.f32.gmra.mrb[0].mxu0 %v1093
      %v1290 = vpop.f32.mrb[0].mxu0
      %v1291 = vadd.f32 %v958, %v1290
      %v1292 = vpop.f32.mrb[0].mxu0
      %v1293 = vadd.f32 %v958, %v1292
      %1294 = vmatprep.mubr.f32.mxu0 0.0
      %1295 = vmatmul.mubr.f32.gmra.mrb[0].mxu0 %v1096
      %v1296 = vpop.f32.mrb[0].mxu0
      %v1297 = vadd.f32 %v963, %v1296
      %v1298 = vpop.f32.mrb[0].mxu0
      %v1299 = vadd.f32 %v963, %v1298
      %1300 = vmatprep.mubr.f32.mxu0 0.0
      %1301 = vmatmul.mubr.f32.gmra.mrb[0].mxu0 %v1099
      %v1302 = vpop.f32.mrb[0].mxu0
      %v1303 = vadd.f32 %v968, %v1302
      %v1304 = vpop.f32.mrb[0].mxu0
      %v1305 = vadd.f32 %v968, %v1304
      %1306 = vmatprep.mubr.f32.mxu0 0.0
      %1307 = vmatmul.mubr.f32.gmra.mrb[0].mxu0 %v1102
      %v1308 = vpop.f32.mrb[0].mxu0
      %v1309 = vadd.f32 %v973, %v1308
      %v1310 = vpop.f32.mrb[0].mxu0
      %v1311 = vadd.f32 %v973, %v1310
      %1312 = vmatprep.mubr.f32.mxu0 0.0
      %1313 = vmatmul.mubr.f32.gmra.mrb[0].mxu0 %v1105
      %v1314 = vpop.f32.mrb[0].mxu0
      %v1315 = vadd.f32 %v978, %v1314
      %v1316 = vpop.f32.mrb[0].mxu0
      %v1317 = vadd.f32 %v978, %v1316
      %1318 = vmatprep.mubr.f32.mxu0 0.0
      %1319 = vmatmul.mubr.f32.gmra.mrb[0].mxu0 %v1108
      %v1320 = vpop.f32.mrb[0].mxu0
      %v1321 = vadd.f32 %v983, %v1320
      %v1322 = vpop.f32.mrb[0].mxu0
      %v1323 = vadd.f32 %v983, %v1322
      %1324 = vmatprep.mubr.f32.mxu0 0.0
      %1325 = vmatmul.mubr.f32.gmra.mrb[0].mxu0 %v1111
      %v1326 = vpop.f32.mrb[0].mxu0
      %v1327 = vadd.f32 %v988, %v1326
      %v1328 = vpop.f32.mrb[0].mxu0
      %v1329 = vadd.f32 %v988, %v1328
      %1330 = vmatprep.mubr.f32.mxu0 0.0
      %1331 = vmatmul.mubr.f32.gmra.mrb[0].mxu0 %v1114
      %v1332 = vpop.f32.mrb[0].mxu0
      %v1333 = vadd.f32 %v993, %v1332
      %v1334 = vpop.f32.mrb[0].mxu0
      %v1335 = vadd.f32 %v993, %v1334
      %1336 = vmatprep.mubr.f32.mxu0 0.0
      %1337 = vmatmul.mubr.f32.gmra.mrb[0].mxu0 %v1117
      %v1338 = vpop.f32.mrb[0].mxu0
      %v1339 = vadd.f32 %v998, %v1338
      %v1340 = vpop.f32.mrb[0].mxu0
      %v1341 = vadd.f32 %v998, %v1340
      %1342 = vmatprep.mubr.f32.mxu0 0.0
      %1343 = vmatmul.mubr.f32.gmra.mrb[0].mxu0 %v1120
      %v1344 = vpop.f32.mrb[0].mxu0
      %v1345 = vadd.f32 %v1003, %v1344
      %v1346 = vpop.f32.mrb[0].mxu0
      %v1347 = vadd.f32 %v1003, %v1346
      %1348 = vmatprep.mubr.f32.mxu0 0.0
      %1349 = vmatmul.mubr.f32.gmra.mrb[0].mxu0 %v1123
      %v1350 = vpop.f32.mrb[0].mxu0
      %v1351 = vadd.f32 %v1008, %v1350
      %v1352 = vpop.f32.mrb[0].mxu0
      %v1353 = vadd.f32 %v1008, %v1352
      %1354 = vmatprep.mubr.f32.mxu0 0.0
      %1355 = vmatmul.mubr.f32.gmra.mrb[0].mxu0 %v1126
      %v1356 = vpop.f32.mrb[0].mxu0
      %v1357 = vadd.f32 %v1013, %v1356
      %v1358 = vpop.f32.mrb[0].mxu0
      %v1359 = vadd.f32 %v1013, %v1358
      %1360 = vmatprep.mubr.f32.mxu0 0.0
      %1361 = vmatmul.mubr.f32.gmra.mrb[0].mxu0 %v1129
      %v1362 = vpop.f32.mrb[0].mxu0
      %v1363 = vadd.f32 %v1018, %v1362
      %v1364 = vpop.f32.mrb[0].mxu0
      %v1365 = vadd.f32 %v1018, %v1364
      %1366 = vmatprep.mubr.f32.mxu0 0.0
      %1367 = vmatmul.mubr.f32.gmra.mrb[0].mxu0 %v1132
      %v1368 = vpop.f32.mrb[0].mxu0
      %v1369 = vadd.f32 %v1023, %v1368
      %v1370 = vpop.f32.mrb[0].mxu0
      %v1371 = vadd.f32 %v1023, %v1370
      %1372 = vmatprep.mubr.f32.mxu0 0.0
      %1373 = vmatmul.mubr.f32.gmra.mrb[0].mxu0 %v1135
      %v1374 = vpop.f32.mrb[0].mxu0
      %v1375 = vadd.f32 %v1028, %v1374
      %v1376 = vpop.f32.mrb[0].mxu0
      %v1377 = vadd.f32 %v1028, %v1376
      %1378 = vmatprep.mubr.f32.mxu0 0.0
      %1379 = vmatmul.mubr.f32.gmra.mrb[0].mxu0 %v1138
      %v1380 = vpop.f32.mrb[0].mxu0
      %v1381 = vadd.f32 %v1033, %v1380
      %v1382 = vpop.f32.mrb[0].mxu0
      %v1383 = vadd.f32 %v1033, %v1382
      %1384 = vmatprep.mubr.f32.mxu0 0.0
      %1385 = vmatmul.mubr.f32.gmra.mrb[0].mxu0 %v1141
      %v1386 = vpop.f32.mrb[0].mxu0
      %v1387 = vadd.f32 %v1038, %v1386
      %v1388 = vpop.f32.mrb[0].mxu0
      %v1389 = vadd.f32 %v1038, %v1388
      %1390 = vmatprep.mubr.f32.mxu0 0.0
      %1391 = vmatmul.mubr.f32.gmra.mrb[0].mxu0 %v1144
      %v1392 = vpop.f32.mrb[0].mxu0
      %v1393 = vadd.f32 %v1043, %v1392
      %v1394 = vpop.f32.mrb[0].mxu0
      %v1395 = vadd.f32 %v1043, %v1394
      %1396 = vmatprep.mubr.f32.mxu0 0.0
      %1397 = vmatmul.mubr.f32.gmra.mrb[0].mxu0 %v1147
      %v1398 = vpop.f32.mrb[0].mxu0
      %v1399 = vadd.f32 %v1048, %v1398
      %v1400 = vpop.f32.mrb[0].mxu0
      %v1401 = vadd.f32 %v1048, %v1400
      %1402 = vmatprep.mubr.f32.mxu0 0.0
      %1403 = vmatmul.mubr.f32.gmra.mrb[0].mxu0 %v1150
      %v1404 = vpop.f32.mrb[0].mxu0
      %v1405 = vadd.f32 %v1053, %v1404
      %v1406 = vpop.f32.mrb[0].mxu0
      %v1407 = vadd.f32 %v1053, %v1406
      %1408 = vdwg.mxu0
      %1409 = vmatprep.subr.mxu0 0.0
      %1410 = vmatpush1.msra.mxu0 %v827
      %1411 = vmatprep.subr.mxu0 0.0
      %1412 = vmatpush1.msra.mxu0 %v830
      %1413 = vmatprep.subr.mxu0 0.0
      %1414 = vmatpush1.msra.mxu0 0.0
      %1415 = vmatprep.subr.mxu0 0.0
      %1416 = vmatpush1.msra.mxu0 0.0
      %1417 = vmatprep.subr.mxu0 0.0
      %1418 = vmatpush1.msra.mxu0 0.0
      %1419 = vmatprep.subr.mxu0 0.0
      %1420 = vmatpush1.msra.mxu0 0.0
      %1421 = vmatprep.subr.mxu0 0.0
      %1422 = vmatpush1.msra.mxu0 0.0
      %1423 = vmatprep.subr.mxu0 0.0
      %1424 = vmatpush1.msra.mxu0 0.0
      %1425 = vmatprep.subr.mxu0 0.0
      %1426 = vmatpush1.msra.mxu0 0.0
      %1427 = vmatprep.subr.mxu0 0.0
      %1428 = vmatpush1.msra.mxu0 0.0
      %1429 = vmatprep.subr.mxu0 0.0
      %1430 = vmatpush1.msra.mxu0 0.0
      %1431 = vmatprep.subr.mxu0 0.0
      %1432 = vmatpush1.msra.mxu0 0.0
      %1433 = vmatprep.subr.mxu0 0.0
      %1434 = vmatpush1.msra.mxu0 0.0
      %1435 = vmatprep.subr.mxu0 0.0
      %1436 = vmatpush1.msra.mxu0 0.0
      %1437 = vmatprep.subr.mxu0 0.0
      %1438 = vmatpush1.msra.mxu0 0.0
      %1439 = vmatprep.subr.mxu0 0.0
      %1440 = vmatpush1.msra.mxu0 0.0
      %1441 = vmatprep.subr.mxu0 0.0
      %1442 = vmatpush1.msra.mxu0 0.0
      %1443 = vmatprep.subr.mxu0 0.0
      %1444 = vmatpush1.msra.mxu0 0.0
      %1445 = vmatprep.subr.mxu0 0.0
      %1446 = vmatpush1.msra.mxu0 0.0
      %1447 = vmatprep.subr.mxu0 0.0
      %1448 = vmatpush1.msra.mxu0 0.0
      %1449 = vmatprep.subr.mxu0 0.0
      %1450 = vmatpush1.msra.mxu0 0.0
      %1451 = vmatprep.subr.mxu0 0.0
      %1452 = vmatpush1.msra.mxu0 0.0
      %1453 = vmatprep.subr.mxu0 0.0
      %1454 = vmatpush1.msra.mxu0 0.0
      %1455 = vmatprep.subr.mxu0 0.0
      %1456 = vmatpush1.msra.mxu0 0.0
      %1457 = vmatprep.subr.mxu0 0.0
      %1458 = vmatpush1.msra.mxu0 0.0
      %1459 = vmatprep.subr.mxu0 0.0
      %1460 = vmatpush1.msra.mxu0 0.0
      %1461 = vmatprep.subr.mxu0 0.0
      %1462 = vmatpush1.msra.mxu0 0.0
      %1463 = vmatprep.subr.mxu0 0.0
      %1464 = vmatpush1.msra.mxu0 0.0
      %1465 = vmatprep.subr.mxu0 0.0
      %1466 = vmatpush1.msra.mxu0 0.0
      %1467 = vmatprep.subr.mxu0 0.0
      %1468 = vmatpush1.msra.mxu0 0.0
      %1469 = vmatprep.subr.mxu0 0.0
      %1470 = vmatpush1.msra.mxu0 0.0
      %1471 = vmatprep.subr.mxu0 0.0
      %1472 = vmatpush1.msra.mxu0 0.0
      %1473 = vmatprep.mubr.f32.mxu0 0.0
      %1474 = vmatmul.mubr.f32.gmra.mrb[0].mxu0 %v1057
      %v1475 = vpop.f32.mrb[0].mxu0
      %v1476 = vadd.f32 %v898, %v1475
      %v1477 = vpop.f32.mrb[0].mxu0
      %1478 = vmatprep.mubr.f32.mxu0 0.0
      %1479 = vmatmul.mubr.f32.gmra.mrb[0].mxu0 %v1060
      %v1480 = vpop.f32.mrb[0].mxu0
      %v1481 = vadd.f32 %v903, %v1480
      %v1482 = vpop.f32.mrb[0].mxu0
      %1483 = vmatprep.mubr.f32.mxu0 0.0
      %1484 = vmatmul.mubr.f32.gmra.mrb[0].mxu0 %v1063
      %v1485 = vpop.f32.mrb[0].mxu0
      %v1486 = vadd.f32 %v908, %v1485
      %v1487 = vpop.f32.mrb[0].mxu0
      %1488 = vmatprep.mubr.f32.mxu0 0.0
      %1489 = vmatmul.mubr.f32.gmra.mrb[0].mxu0 %v1066
      %v1490 = vpop.f32.mrb[0].mxu0
      %v1491 = vadd.f32 %v913, %v1490
      %v1492 = vpop.f32.mrb[0].mxu0
      %1493 = vmatprep.mubr.f32.mxu0 0.0
      %1494 = vmatmul.mubr.f32.gmra.mrb[0].mxu0 %v1069
      %v1495 = vpop.f32.mrb[0].mxu0
      %v1496 = vadd.f32 %v918, %v1495
      %v1497 = vpop.f32.mrb[0].mxu0
      %1498 = vmatprep.mubr.f32.mxu0 0.0
      %1499 = vmatmul.mubr.f32.gmra.mrb[0].mxu0 %v1072
      %v1500 = vpop.f32.mrb[0].mxu0
      %v1501 = vadd.f32 %v923, %v1500
      %v1502 = vpop.f32.mrb[0].mxu0
      %1503 = vmatprep.mubr.f32.mxu0 0.0
      %1504 = vmatmul.mubr.f32.gmra.mrb[0].mxu0 %v1075
      %v1505 = vpop.f32.mrb[0].mxu0
      %v1506 = vadd.f32 %v928, %v1505
      %v1507 = vpop.f32.mrb[0].mxu0
      %1508 = vmatprep.mubr.f32.mxu0 0.0
      %1509 = vmatmul.mubr.f32.gmra.mrb[0].mxu0 %v1078
      %v1510 = vpop.f32.mrb[0].mxu0
      %v1511 = vadd.f32 %v933, %v1510
      %v1512 = vpop.f32.mrb[0].mxu0
      %1513 = vmatprep.mubr.f32.mxu0 0.0
      %1514 = vmatmul.mubr.f32.gmra.mrb[0].mxu0 %v1081
      %v1515 = vpop.f32.mrb[0].mxu0
      %v1516 = vadd.f32 %v938, %v1515
      %v1517 = vpop.f32.mrb[0].mxu0
      %1518 = vmatprep.mubr.f32.mxu0 0.0
      %1519 = vmatmul.mubr.f32.gmra.mrb[0].mxu0 %v1084
      %v1520 = vpop.f32.mrb[0].mxu0
      %v1521 = vadd.f32 %v943, %v1520
      %v1522 = vpop.f32.mrb[0].mxu0
      %1523 = vmatprep.mubr.f32.mxu0 0.0
      %1524 = vmatmul.mubr.f32.gmra.mrb[0].mxu0 %v1087
      %v1525 = vpop.f32.mrb[0].mxu0
      %v1526 = vadd.f32 %v948, %v1525
      %v1527 = vpop.f32.mrb[0].mxu0
      %1528 = vmatprep.mubr.f32.mxu0 0.0
      %1529 = vmatmul.mubr.f32.gmra.mrb[0].mxu0 %v1090
      %v1530 = vpop.f32.mrb[0].mxu0
      %v1531 = vadd.f32 %v953, %v1530
      %v1532 = vpop.f32.mrb[0].mxu0
      %1533 = vmatprep.mubr.f32.mxu0 0.0
      %1534 = vmatmul.mubr.f32.gmra.mrb[0].mxu0 %v1093
      %v1535 = vpop.f32.mrb[0].mxu0
      %v1536 = vadd.f32 %v958, %v1535
      %v1537 = vpop.f32.mrb[0].mxu0
      %1538 = vmatprep.mubr.f32.mxu0 0.0
      %1539 = vmatmul.mubr.f32.gmra.mrb[0].mxu0 %v1096
      %v1540 = vpop.f32.mrb[0].mxu0
      %v1541 = vadd.f32 %v963, %v1540
      %v1542 = vpop.f32.mrb[0].mxu0
      %1543 = vmatprep.mubr.f32.mxu0 0.0
      %1544 = vmatmul.mubr.f32.gmra.mrb[0].mxu0 %v1099
      %v1545 = vpop.f32.mrb[0].mxu0
      %v1546 = vadd.f32 %v968, %v1545
      %v1547 = vpop.f32.mrb[0].mxu0
      %1548 = vmatprep.mubr.f32.mxu0 0.0
      %1549 = vmatmul.mubr.f32.gmra.mrb[0].mxu0 %v1102
      %v1550 = vpop.f32.mrb[0].mxu0
      %v1551 = vadd.f32 %v973, %v1550
      %v1552 = vpop.f32.mrb[0].mxu0
      %1553 = vmatprep.mubr.f32.mxu0 0.0
      %1554 = vmatmul.mubr.f32.gmra.mrb[0].mxu0 %v1105
      %v1555 = vpop.f32.mrb[0].mxu0
      %v1556 = vadd.f32 %v978, %v1555
      %v1557 = vpop.f32.mrb[0].mxu0
      %1558 = vmatprep.mubr.f32.mxu0 0.0
      %1559 = vmatmul.mubr.f32.gmra.mrb[0].mxu0 %v1108
      %v1560 = vpop.f32.mrb[0].mxu0
      %v1561 = vadd.f32 %v983, %v1560
      %v1562 = vpop.f32.mrb[0].mxu0
      %1563 = vmatprep.mubr.f32.mxu0 0.0
      %1564 = vmatmul.mubr.f32.gmra.mrb[0].mxu0 %v1111
      %v1565 = vpop.f32.mrb[0].mxu0
      %v1566 = vadd.f32 %v988, %v1565
      %v1567 = vpop.f32.mrb[0].mxu0
      %1568 = vmatprep.mubr.f32.mxu0 0.0
      %1569 = vmatmul.mubr.f32.gmra.mrb[0].mxu0 %v1114
      %v1570 = vpop.f32.mrb[0].mxu0
      %v1571 = vadd.f32 %v993, %v1570
      %v1572 = vpop.f32.mrb[0].mxu0
      %1573 = vmatprep.mubr.f32.mxu0 0.0
      %1574 = vmatmul.mubr.f32.gmra.mrb[0].mxu0 %v1117
      %v1575 = vpop.f32.mrb[0].mxu0
      %v1576 = vadd.f32 %v998, %v1575
      %v1577 = vpop.f32.mrb[0].mxu0
      %1578 = vmatprep.mubr.f32.mxu0 0.0
      %1579 = vmatmul.mubr.f32.gmra.mrb[0].mxu0 %v1120
      %v1580 = vpop.f32.mrb[0].mxu0
      %v1581 = vadd.f32 %v1003, %v1580
      %v1582 = vpop.f32.mrb[0].mxu0
      %1583 = vmatprep.mubr.f32.mxu0 0.0
      %1584 = vmatmul.mubr.f32.gmra.mrb[0].mxu0 %v1123
      %v1585 = vpop.f32.mrb[0].mxu0
      %v1586 = vadd.f32 %v1008, %v1585
      %v1587 = vpop.f32.mrb[0].mxu0
      %1588 = vmatprep.mubr.f32.mxu0 0.0
      %1589 = vmatmul.mubr.f32.gmra.mrb[0].mxu0 %v1126
      %v1590 = vpop.f32.mrb[0].mxu0
      %v1591 = vadd.f32 %v1013, %v1590
      %v1592 = vpop.f32.mrb[0].mxu0
      %1593 = vmatprep.mubr.f32.mxu0 0.0
      %1594 = vmatmul.mubr.f32.gmra.mrb[0].mxu0 %v1129
      %v1595 = vpop.f32.mrb[0].mxu0
      %v1596 = vadd.f32 %v1018, %v1595
      %v1597 = vpop.f32.mrb[0].mxu0
      %1598 = vmatprep.mubr.f32.mxu0 0.0
      %1599 = vmatmul.mubr.f32.gmra.mrb[0].mxu0 %v1132
      %v1600 = vpop.f32.mrb[0].mxu0
      %v1601 = vadd.f32 %v1023, %v1600
      %v1602 = vpop.f32.mrb[0].mxu0
      %1603 = vmatprep.mubr.f32.mxu0 0.0
      %1604 = vmatmul.mubr.f32.gmra.mrb[0].mxu0 %v1135
      %v1605 = vpop.f32.mrb[0].mxu0
      %v1606 = vadd.f32 %v1028, %v1605
      %v1607 = vpop.f32.mrb[0].mxu0
      %1608 = vmatprep.mubr.f32.mxu0 0.0
      %1609 = vmatmul.mubr.f32.gmra.mrb[0].mxu0 %v1138
      %v1610 = vpop.f32.mrb[0].mxu0
      %v1611 = vadd.f32 %v1033, %v1610
      %v1612 = vpop.f32.mrb[0].mxu0
      %1613 = vmatprep.mubr.f32.mxu0 0.0
      %1614 = vmatmul.mubr.f32.gmra.mrb[0].mxu0 %v1141
      %v1615 = vpop.f32.mrb[0].mxu0
      %v1616 = vadd.f32 %v1038, %v1615
      %v1617 = vpop.f32.mrb[0].mxu0
      %1618 = vmatprep.mubr.f32.mxu0 0.0
      %1619 = vmatmul.mubr.f32.gmra.mrb[0].mxu0 %v1144
      %v1620 = vpop.f32.mrb[0].mxu0
      %v1621 = vadd.f32 %v1043, %v1620
      %v1622 = vpop.f32.mrb[0].mxu0
      %1623 = vmatprep.mubr.f32.mxu0 0.0
      %1624 = vmatmul.mubr.f32.gmra.mrb[0].mxu0 %v1147
      %v1625 = vpop.f32.mrb[0].mxu0
      %v1626 = vadd.f32 %v1048, %v1625
      %v1627 = vpop.f32.mrb[0].mxu0
      %1628 = vmatprep.mubr.f32.mxu0 0.0
      %1629 = vmatmul.mubr.f32.gmra.mrb[0].mxu0 %v1150
      %v1630 = vpop.f32.mrb[0].mxu0
      %v1631 = vadd.f32 %v1053, %v1630
      %v1632 = vpop.f32.mrb[0].mxu0
      %1633 = vdwg.mxu0
      %v1634 = vmax.f32 %v1219, 0.0
      %v1635 = vmax.f32 %v1221, 0.0
      %v1636 = vmax.f32 %v1476, 0.0
      %v1637 = vmax.f32 %v1225, 0.0
      %v1638 = vmax.f32 %v1227, 0.0
      %v1639 = vmax.f32 %v1481, 0.0
      %v1640 = vmax.f32 %v1231, 0.0
      %v1641 = vmax.f32 %v1233, 0.0
      %v1642 = vmax.f32 %v1486, 0.0
      %v1643 = vmax.f32 %v1237, 0.0
      %v1644 = vmax.f32 %v1239, 0.0
      %v1645 = vmax.f32 %v1491, 0.0
      %v1646 = vmax.f32 %v1243, 0.0
      %v1647 = vmax.f32 %v1245, 0.0
      %v1648 = vmax.f32 %v1496, 0.0
      %v1649 = vmax.f32 %v1249, 0.0
      %v1650 = vmax.f32 %v1251, 0.0
      %v1651 = vmax.f32 %v1501, 0.0
      %v1652 = vmax.f32 %v1255, 0.0
      %v1653 = vmax.f32 %v1257, 0.0
      %v1654 = vmax.f32 %v1506, 0.0
      %v1655 = vmax.f32 %v1261, 0.0
      %v1656 = vmax.f32 %v1263, 0.0
      %v1657 = vmax.f32 %v1511, 0.0
      %v1658 = vmax.f32 %v1267, 0.0
      %v1659 = vmax.f32 %v1269, 0.0
      %v1660 = vmax.f32 %v1516, 0.0
      %v1661 = vmax.f32 %v1273, 0.0
      %v1662 = vmax.f32 %v1275, 0.0
      %v1663 = vmax.f32 %v1521, 0.0
      %v1664 = vmax.f32 %v1279, 0.0
      %v1665 = vmax.f32 %v1281, 0.0
      %v1666 = vmax.f32 %v1526, 0.0
      %v1667 = vmax.f32 %v1285, 0.0
      %v1668 = vmax.f32 %v1287, 0.0
      %v1669 = vmax.f32 %v1531, 0.0
      %v1670 = vmax.f32 %v1291, 0.0
      %v1671 = vmax.f32 %v1293, 0.0
      %v1672 = vmax.f32 %v1536, 0.0
      %v1673 = vmax.f32 %v1297, 0.0
      %v1674 = vmax.f32 %v1299, 0.0
      %v1675 = vmax.f32 %v1541, 0.0
      %v1676 = vmax.f32 %v1303, 0.0
      %v1677 = vmax.f32 %v1305, 0.0
      %v1678 = vmax.f32 %v1546, 0.0
      %v1679 = vmax.f32 %v1309, 0.0
      %v1680 = vmax.f32 %v1311, 0.0
      %v1681 = vmax.f32 %v1551, 0.0
      %v1682 = vmax.f32 %v1315, 0.0
      %v1683 = vmax.f32 %v1317, 0.0
      %v1684 = vmax.f32 %v1556, 0.0
      %v1685 = vmax.f32 %v1321, 0.0
      %v1686 = vmax.f32 %v1323, 0.0
      %v1687 = vmax.f32 %v1561, 0.0
      %v1688 = vmax.f32 %v1327, 0.0
      %v1689 = vmax.f32 %v1329, 0.0
      %v1690 = vmax.f32 %v1566, 0.0
      %v1691 = vmax.f32 %v1333, 0.0
      %v1692 = vmax.f32 %v1335, 0.0
      %v1693 = vmax.f32 %v1571, 0.0
      %v1694 = vmax.f32 %v1339, 0.0
      %v1695 = vmax.f32 %v1341, 0.0
      %v1696 = vmax.f32 %v1576, 0.0
      %v1697 = vmax.f32 %v1345, 0.0
      %v1698 = vmax.f32 %v1347, 0.0
      %v1699 = vmax.f32 %v1581, 0.0
      %v1700 = vmax.f32 %v1351, 0.0
      %v1701 = vmax.f32 %v1353, 0.0
      %v1702 = vmax.f32 %v1586, 0.0
      %v1703 = vmax.f32 %v1357, 0.0
      %v1704 = vmax.f32 %v1359, 0.0
      %v1705 = vmax.f32 %v1591, 0.0
      %v1706 = vmax.f32 %v1363, 0.0
      %v1707 = vmax.f32 %v1365, 0.0
      %v1708 = vmax.f32 %v1596, 0.0
      %v1709 = vmax.f32 %v1369, 0.0
      %v1710 = vmax.f32 %v1371, 0.0
      %v1711 = vmax.f32 %v1601, 0.0
      %v1712 = vmax.f32 %v1375, 0.0
      %v1713 = vmax.f32 %v1377, 0.0
      %v1714 = vmax.f32 %v1606, 0.0
      %v1715 = vmax.f32 %v1381, 0.0
      %v1716 = vmax.f32 %v1383, 0.0
      %v1717 = vmax.f32 %v1611, 0.0
      %v1718 = vmax.f32 %v1387, 0.0
      %v1719 = vmax.f32 %v1389, 0.0
      %v1720 = vmax.f32 %v1616, 0.0
      %v1721 = vmax.f32 %v1393, 0.0
      %v1722 = vmax.f32 %v1395, 0.0
      %v1723 = vmax.f32 %v1621, 0.0
      %v1724 = vmax.f32 %v1399, 0.0
      %v1725 = vmax.f32 %v1401, 0.0
      %v1726 = vmax.f32 %v1626, 0.0
      %v1727 = vmax.f32 %v1405, 0.0
      %v1728 = vmax.f32 %v1407, 0.0
      %v1729 = vmax.f32 %v1631, 0.0
      %v1730 = vmin.f32 %v1634, 6.0
      %v1731 = vmin.f32 %v1635, 6.0
      %v1732 = vmin.f32 %v1636, 6.0
      %v1733 = vmin.f32 %v1637, 6.0
      %v1734 = vmin.f32 %v1638, 6.0
      %v1735 = vmin.f32 %v1639, 6.0
      %v1736 = vmin.f32 %v1640, 6.0
      %v1737 = vmin.f32 %v1641, 6.0
      %v1738 = vmin.f32 %v1642, 6.0
      %v1739 = vmin.f32 %v1643, 6.0
      %v1740 = vmin.f32 %v1644, 6.0
      %v1741 = vmin.f32 %v1645, 6.0
      %v1742 = vmin.f32 %v1646, 6.0
      %v1743 = vmin.f32 %v1647, 6.0
      %v1744 = vmin.f32 %v1648, 6.0
      %v1745 = vmin.f32 %v1649, 6.0
      %v1746 = vmin.f32 %v1650, 6.0
      %v1747 = vmin.f32 %v1651, 6.0
      %v1748 = vmin.f32 %v1652, 6.0
      %v1749 = vmin.f32 %v1653, 6.0
      %v1750 = vmin.f32 %v1654, 6.0
      %v1751 = vmin.f32 %v1655, 6.0
      %v1752 = vmin.f32 %v1656, 6.0
      %v1753 = vmin.f32 %v1657, 6.0
      %v1754 = vmin.f32 %v1658, 6.0
      %v1755 = vmin.f32 %v1659, 6.0
      %v1756 = vmin.f32 %v1660, 6.0
      %v1757 = vmin.f32 %v1661, 6.0
      %v1758 = vmin.f32 %v1662, 6.0
      %v1759 = vmin.f32 %v1663, 6.0
      %v1760 = vmin.f32 %v1664, 6.0
      %v1761 = vmin.f32 %v1665, 6.0
      %v1762 = vmin.f32 %v1666, 6.0
      %v1763 = vmin.f32 %v1667, 6.0
      %v1764 = vmin.f32 %v1668, 6.0
      %v1765 = vmin.f32 %v1669, 6.0
      %v1766 = vmin.f32 %v1670, 6.0
      %v1767 = vmin.f32 %v1671, 6.0
      %v1768 = vmin.f32 %v1672, 6.0
      %v1769 = vmin.f32 %v1673, 6.0
      %v1770 = vmin.f32 %v1674, 6.0
      %v1771 = vmin.f32 %v1675, 6.0
      %v1772 = vmin.f32 %v1676, 6.0
      %v1773 = vmin.f32 %v1677, 6.0
      %v1774 = vmin.f32 %v1678, 6.0
      %v1775 = vmin.f32 %v1679, 6.0
      %v1776 = vmin.f32 %v1680, 6.0
      %v1777 = vmin.f32 %v1681, 6.0
      %v1778 = vmin.f32 %v1682, 6.0
      %v1779 = vmin.f32 %v1683, 6.0
      %v1780 = vmin.f32 %v1684, 6.0
      %v1781 = vmin.f32 %v1685, 6.0
      %v1782 = vmin.f32 %v1686, 6.0
      %v1783 = vmin.f32 %v1687, 6.0
      %v1784 = vmin.f32 %v1688, 6.0
      %v1785 = vmin.f32 %v1689, 6.0
      %v1786 = vmin.f32 %v1690, 6.0
      %v1787 = vmin.f32 %v1691, 6.0
      %v1788 = vmin.f32 %v1692, 6.0
      %v1789 = vmin.f32 %v1693, 6.0
      %v1790 = vmin.f32 %v1694, 6.0
      %v1791 = vmin.f32 %v1695, 6.0
      %v1792 = vmin.f32 %v1696, 6.0
      %v1793 = vmin.f32 %v1697, 6.0
      %v1794 = vmin.f32 %v1698, 6.0
      %v1795 = vmin.f32 %v1699, 6.0
      %v1796 = vmin.f32 %v1700, 6.0
      %v1797 = vmin.f32 %v1701, 6.0
      %v1798 = vmin.f32 %v1702, 6.0
      %v1799 = vmin.f32 %v1703, 6.0
      %v1800 = vmin.f32 %v1704, 6.0
      %v1801 = vmin.f32 %v1705, 6.0
      %v1802 = vmin.f32 %v1706, 6.0
      %v1803 = vmin.f32 %v1707, 6.0
      %v1804 = vmin.f32 %v1708, 6.0
      %v1805 = vmin.f32 %v1709, 6.0
      %v1806 = vmin.f32 %v1710, 6.0
      %v1807 = vmin.f32 %v1711, 6.0
      %v1808 = vmin.f32 %v1712, 6.0
      %v1809 = vmin.f32 %v1713, 6.0
      %v1810 = vmin.f32 %v1714, 6.0
      %v1811 = vmin.f32 %v1715, 6.0
      %v1812 = vmin.f32 %v1716, 6.0
      %v1813 = vmin.f32 %v1717, 6.0
      %v1814 = vmin.f32 %v1718, 6.0
      %v1815 = vmin.f32 %v1719, 6.0
      %v1816 = vmin.f32 %v1720, 6.0
      %v1817 = vmin.f32 %v1721, 6.0
      %v1818 = vmin.f32 %v1722, 6.0
      %v1819 = vmin.f32 %v1723, 6.0
      %v1820 = vmin.f32 %v1724, 6.0
      %v1821 = vmin.f32 %v1725, 6.0
      %v1822 = vmin.f32 %v1726, 6.0
      %v1823 = vmin.f32 %v1727, 6.0
      %v1824 = vmin.f32 %v1728, 6.0
      %v1825 = vmin.f32 %v1729, 6.0
      %v1826 = vmax.f32 %v863, 0.0
      %v1827 = vmax.f32 %v864, 0.0
      %v1828 = vmax.f32 %v865, 0.0
      %v1829 = vmax.f32 %v866, 0.0
      %v1830 = vmax.f32 %v867, 0.0
      %v1831 = vmax.f32 %v868, 0.0
      %v1832 = vmax.f32 %v869, 0.0
      %v1833 = vmax.f32 %v870, 0.0
      %v1834 = vmax.f32 %v871, 0.0
      %v1835 = vmax.f32 %v872, 0.0
      %v1836 = vmax.f32 %v873, 0.0
      %v1837 = vmax.f32 %v874, 0.0
      %v1838 = vmax.f32 %v875, 0.0
      %v1839 = vmax.f32 %v876, 0.0
      %v1840 = vmax.f32 %v877, 0.0
      %v1841 = vmax.f32 %v878, 0.0
      %v1842 = vmax.f32 %v879, 0.0
      %v1843 = vmax.f32 %v880, 0.0
      %v1844 = vmax.f32 %v881, 0.0
      %v1845 = vmax.f32 %v882, 0.0
      %v1846 = vmax.f32 %v883, 0.0
      %v1847 = vmax.f32 %v884, 0.0
      %v1848 = vmax.f32 %v885, 0.0
      %v1849 = vmax.f32 %v886, 0.0
      %v1850 = vmax.f32 %v887, 0.0
      %v1851 = vmax.f32 %v888, 0.0
      %v1852 = vmax.f32 %v889, 0.0
      %v1853 = vmax.f32 %v890, 0.0
      %v1854 = vmax.f32 %v891, 0.0
      %v1855 = vmax.f32 %v892, 0.0
      %v1856 = vmax.f32 %v893, 0.0
      %v1857 = vmax.f32 %v894, 0.0
      %v1858 = vmin.f32 %v1826, 6.0
      %v1859 = vmin.f32 %v1827, 6.0
      %v1860 = vmin.f32 %v1828, 6.0
      %v1861 = vmin.f32 %v1829, 6.0
      %v1862 = vmin.f32 %v1830, 6.0
      %v1863 = vmin.f32 %v1831, 6.0
      %v1864 = vmin.f32 %v1832, 6.0
      %v1865 = vmin.f32 %v1833, 6.0
      %v1866 = vmin.f32 %v1834, 6.0
      %v1867 = vmin.f32 %v1835, 6.0
      %v1868 = vmin.f32 %v1836, 6.0
      %v1869 = vmin.f32 %v1837, 6.0
      %v1870 = vmin.f32 %v1838, 6.0
      %v1871 = vmin.f32 %v1839, 6.0
      %v1872 = vmin.f32 %v1840, 6.0
      %v1873 = vmin.f32 %v1841, 6.0
      %v1874 = vmin.f32 %v1842, 6.0
      %v1875 = vmin.f32 %v1843, 6.0
      %v1876 = vmin.f32 %v1844, 6.0
      %v1877 = vmin.f32 %v1845, 6.0
      %v1878 = vmin.f32 %v1846, 6.0
      %v1879 = vmin.f32 %v1847, 6.0
      %v1880 = vmin.f32 %v1848, 6.0
      %v1881 = vmin.f32 %v1849, 6.0
      %v1882 = vmin.f32 %v1850, 6.0
      %v1883 = vmin.f32 %v1851, 6.0
      %v1884 = vmin.f32 %v1852, 6.0
      %v1885 = vmin.f32 %v1853, 6.0
      %v1886 = vmin.f32 %v1854, 6.0
      %v1887 = vmin.f32 %v1855, 6.0
      %v1888 = vmin.f32 %v1856, 6.0
      %v1889 = vmin.f32 %v1857, 6.0
      %v1890 = vadd.f32 %v1730, %v1731
      %vm1891 = vcmask 261120
      %v1892 = vsel %vm1891, %v1732, 0.0
      %v1893 = vadd.f32 %v1890, %v1892
      %1894 = vadd.xlane.f32.xlu0 %v1893
      %v1895 = vpop.xlane.xlu0 %1894
      %v1896 = vadd.f32 %v1733, %v1734
      %v1897 = vsel %vm1891, %v1735, 0.0
      %v1898 = vadd.f32 %v1896, %v1897
      %1899 = vadd.xlane.f32.xlu0 %v1898
      %v1900 = vpop.xlane.xlu0 %1899
      %v1901 = vadd.f32 %v1736, %v1737
      %v1902 = vsel %vm1891, %v1738, 0.0
      %v1903 = vadd.f32 %v1901, %v1902
      %1904 = vadd.xlane.f32.xlu0 %v1903
      %v1905 = vpop.xlane.xlu0 %1904
      %v1906 = vadd.f32 %v1739, %v1740
      %v1907 = vsel %vm1891, %v1741, 0.0
      %v1908 = vadd.f32 %v1906, %v1907
      %1909 = vadd.xlane.f32.xlu0 %v1908
      %v1910 = vpop.xlane.xlu0 %1909
      %v1911 = vadd.f32 %v1742, %v1743
      %v1912 = vsel %vm1891, %v1744, 0.0
      %v1913 = vadd.f32 %v1911, %v1912
      %1914 = vadd.xlane.f32.xlu0 %v1913
      %v1915 = vpop.xlane.xlu0 %1914
      %v1916 = vadd.f32 %v1745, %v1746
      %v1917 = vsel %vm1891, %v1747, 0.0
      %v1918 = vadd.f32 %v1916, %v1917
      %1919 = vadd.xlane.f32.xlu0 %v1918
      %v1920 = vpop.xlane.xlu0 %1919
      %v1921 = vadd.f32 %v1748, %v1749
      %v1922 = vsel %vm1891, %v1750, 0.0
      %v1923 = vadd.f32 %v1921, %v1922
      %1924 = vadd.xlane.f32.xlu0 %v1923
      %v1925 = vpop.xlane.xlu0 %1924
      %v1926 = vadd.f32 %v1751, %v1752
      %v1927 = vsel %vm1891, %v1753, 0.0
      %v1928 = vadd.f32 %v1926, %v1927
      %1929 = vadd.xlane.f32.xlu0 %v1928
      %v1930 = vpop.xlane.xlu0 %1929
      %v1931 = vadd.f32 %v1754, %v1755
      %v1932 = vsel %vm1891, %v1756, 0.0
      %v1933 = vadd.f32 %v1931, %v1932
      %1934 = vadd.xlane.f32.xlu0 %v1933
      %v1935 = vpop.xlane.xlu0 %1934
      %v1936 = vadd.f32 %v1757, %v1758
      %v1937 = vsel %vm1891, %v1759, 0.0
      %v1938 = vadd.f32 %v1936, %v1937
      %1939 = vadd.xlane.f32.xlu0 %v1938
      %v1940 = vpop.xlane.xlu0 %1939
      %v1941 = vadd.f32 %v1760, %v1761
      %v1942 = vsel %vm1891, %v1762, 0.0
      %v1943 = vadd.f32 %v1941, %v1942
      %1944 = vadd.xlane.f32.xlu0 %v1943
      %v1945 = vpop.xlane.xlu0 %1944
      %v1946 = vadd.f32 %v1763, %v1764
      %v1947 = vsel %vm1891, %v1765, 0.0
      %v1948 = vadd.f32 %v1946, %v1947
      %1949 = vadd.xlane.f32.xlu0 %v1948
      %v1950 = vpop.xlane.xlu0 %1949
      %v1951 = vadd.f32 %v1766, %v1767
      %v1952 = vsel %vm1891, %v1768, 0.0
      %v1953 = vadd.f32 %v1951, %v1952
      %1954 = vadd.xlane.f32.xlu0 %v1953
      %v1955 = vpop.xlane.xlu0 %1954
      %v1956 = vadd.f32 %v1769, %v1770
      %v1957 = vsel %vm1891, %v1771, 0.0
      %v1958 = vadd.f32 %v1956, %v1957
      %1959 = vadd.xlane.f32.xlu0 %v1958
      %v1960 = vpop.xlane.xlu0 %1959
      %v1961 = vadd.f32 %v1772, %v1773
      %v1962 = vsel %vm1891, %v1774, 0.0
      %v1963 = vadd.f32 %v1961, %v1962
      %1964 = vadd.xlane.f32.xlu0 %v1963
      %v1965 = vpop.xlane.xlu0 %1964
      %v1966 = vadd.f32 %v1775, %v1776
      %v1967 = vsel %vm1891, %v1777, 0.0
      %v1968 = vadd.f32 %v1966, %v1967
      %1969 = vadd.xlane.f32.xlu0 %v1968
      %v1970 = vpop.xlane.xlu0 %1969
      %v1971 = vadd.f32 %v1778, %v1779
      %v1972 = vsel %vm1891, %v1780, 0.0
      %v1973 = vadd.f32 %v1971, %v1972
      %1974 = vadd.xlane.f32.xlu0 %v1973
      %v1975 = vpop.xlane.xlu0 %1974
      %v1976 = vadd.f32 %v1781, %v1782
      %v1977 = vsel %vm1891, %v1783, 0.0
      %v1978 = vadd.f32 %v1976, %v1977
      %1979 = vadd.xlane.f32.xlu0 %v1978
      %v1980 = vpop.xlane.xlu0 %1979
      %v1981 = vadd.f32 %v1784, %v1785
      %v1982 = vsel %vm1891, %v1786, 0.0
      %v1983 = vadd.f32 %v1981, %v1982
      %1984 = vadd.xlane.f32.xlu0 %v1983
      %v1985 = vpop.xlane.xlu0 %1984
      %v1986 = vadd.f32 %v1787, %v1788
      %v1987 = vsel %vm1891, %v1789, 0.0
      %v1988 = vadd.f32 %v1986, %v1987
      %1989 = vadd.xlane.f32.xlu0 %v1988
      %v1990 = vpop.xlane.xlu0 %1989
      %v1991 = vadd.f32 %v1790, %v1791
      %v1992 = vsel %vm1891, %v1792, 0.0
      %v1993 = vadd.f32 %v1991, %v1992
      %1994 = vadd.xlane.f32.xlu0 %v1993
      %v1995 = vpop.xlane.xlu0 %1994
      %v1996 = vadd.f32 %v1793, %v1794
      %v1997 = vsel %vm1891, %v1795, 0.0
      %v1998 = vadd.f32 %v1996, %v1997
      %1999 = vadd.xlane.f32.xlu0 %v1998
      %v2000 = vpop.xlane.xlu0 %1999
      %v2001 = vadd.f32 %v1796, %v1797
      %v2002 = vsel %vm1891, %v1798, 0.0
      %v2003 = vadd.f32 %v2001, %v2002
      %2004 = vadd.xlane.f32.xlu0 %v2003
      %v2005 = vpop.xlane.xlu0 %2004
      %v2006 = vadd.f32 %v1799, %v1800
      %v2007 = vsel %vm1891, %v1801, 0.0
      %v2008 = vadd.f32 %v2006, %v2007
      %2009 = vadd.xlane.f32.xlu0 %v2008
      %v2010 = vpop.xlane.xlu0 %2009
      %v2011 = vadd.f32 %v1802, %v1803
      %v2012 = vsel %vm1891, %v1804, 0.0
      %v2013 = vadd.f32 %v2011, %v2012
      %2014 = vadd.xlane.f32.xlu0 %v2013
      %v2015 = vpop.xlane.xlu0 %2014
      %v2016 = vadd.f32 %v1805, %v1806
      %v2017 = vsel %vm1891, %v1807, 0.0
      %v2018 = vadd.f32 %v2016, %v2017
      %2019 = vadd.xlane.f32.xlu0 %v2018
      %v2020 = vpop.xlane.xlu0 %2019
      %v2021 = vadd.f32 %v1808, %v1809
      %v2022 = vsel %vm1891, %v1810, 0.0
      %v2023 = vadd.f32 %v2021, %v2022
      %2024 = vadd.xlane.f32.xlu0 %v2023
      %v2025 = vpop.xlane.xlu0 %2024
      %v2026 = vadd.f32 %v1811, %v1812
      %v2027 = vsel %vm1891, %v1813, 0.0
      %v2028 = vadd.f32 %v2026, %v2027
      %2029 = vadd.xlane.f32.xlu0 %v2028
      %v2030 = vpop.xlane.xlu0 %2029
      %v2031 = vadd.f32 %v1814, %v1815
      %v2032 = vsel %vm1891, %v1816, 0.0
      %v2033 = vadd.f32 %v2031, %v2032
      %2034 = vadd.xlane.f32.xlu0 %v2033
      %v2035 = vpop.xlane.xlu0 %2034
      %v2036 = vadd.f32 %v1817, %v1818
      %v2037 = vsel %vm1891, %v1819, 0.0
      %v2038 = vadd.f32 %v2036, %v2037
      %2039 = vadd.xlane.f32.xlu0 %v2038
      %v2040 = vpop.xlane.xlu0 %2039
      %v2041 = vadd.f32 %v1820, %v1821
      %v2042 = vsel %vm1891, %v1822, 0.0
      %v2043 = vadd.f32 %v2041, %v2042
      %2044 = vadd.xlane.f32.xlu0 %v2043
      %v2045 = vpop.xlane.xlu0 %2044
      %v2046 = vadd.f32 %v1823, %v1824
      %v2047 = vsel %vm1891, %v1825, 0.0
      %v2048 = vadd.f32 %v2046, %v2047
      %2049 = vadd.xlane.f32.xlu0 %v2048
      %v2050 = vpop.xlane.xlu0 %2049
      %v2051 = vmul.f32 %v1858, 32.0
      %v2052 = vmul.f32 %v1859, 32.0
      %v2053 = vmul.f32 %v1860, 32.0
      %v2054 = vmul.f32 %v1861, 32.0
      %v2055 = vmul.f32 %v1862, 32.0
      %v2056 = vmul.f32 %v1863, 32.0
      %v2057 = vmul.f32 %v1864, 32.0
      %v2058 = vmul.f32 %v1865, 32.0
      %v2059 = vmul.f32 %v1866, 32.0
      %v2060 = vmul.f32 %v1867, 32.0
      %v2061 = vmul.f32 %v1868, 32.0
      %v2062 = vmul.f32 %v1869, 32.0
      %v2063 = vmul.f32 %v1870, 32.0
      %v2064 = vmul.f32 %v1871, 32.0
      %v2065 = vmul.f32 %v1872, 32.0
      %v2066 = vmul.f32 %v1873, 32.0
      %v2067 = vmul.f32 %v1874, 32.0
      %v2068 = vmul.f32 %v1875, 32.0
      %v2069 = vmul.f32 %v1876, 32.0
      %v2070 = vmul.f32 %v1877, 32.0
      %v2071 = vmul.f32 %v1878, 32.0
      %v2072 = vmul.f32 %v1879, 32.0
      %v2073 = vmul.f32 %v1880, 32.0
      %v2074 = vmul.f32 %v1881, 32.0
      %v2075 = vmul.f32 %v1882, 32.0
      %v2076 = vmul.f32 %v1883, 32.0
      %v2077 = vmul.f32 %v1884, 32.0
      %v2078 = vmul.f32 %v1885, 32.0
      %v2079 = vmul.f32 %v1886, 32.0
      %v2080 = vmul.f32 %v1887, 32.0
      %v2081 = vmul.f32 %v1888, 32.0
      %v2082 = vmul.f32 %v1889, 32.0
      %v2083 = vsub.f32 %v1895, %v2051
      %v2084 = vsub.f32 %v1900, %v2052
      %v2085 = vsub.f32 %v1905, %v2053
      %v2086 = vsub.f32 %v1910, %v2054
      %v2087 = vsub.f32 %v1915, %v2055
      %v2088 = vsub.f32 %v1920, %v2056
      %v2089 = vsub.f32 %v1925, %v2057
      %v2090 = vsub.f32 %v1930, %v2058
      %v2091 = vsub.f32 %v1935, %v2059
      %v2092 = vsub.f32 %v1940, %v2060
      %v2093 = vsub.f32 %v1945, %v2061
      %v2094 = vsub.f32 %v1950, %v2062
      %v2095 = vsub.f32 %v1955, %v2063
      %v2096 = vsub.f32 %v1960, %v2064
      %v2097 = vsub.f32 %v1965, %v2065
      %v2098 = vsub.f32 %v1970, %v2066
      %v2099 = vsub.f32 %v1975, %v2067
      %v2100 = vsub.f32 %v1980, %v2068
      %v2101 = vsub.f32 %v1985, %v2069
      %v2102 = vsub.f32 %v1990, %v2070
      %v2103 = vsub.f32 %v1995, %v2071
      %v2104 = vsub.f32 %v2000, %v2072
      %v2105 = vsub.f32 %v2005, %v2073
      %v2106 = vsub.f32 %v2010, %v2074
      %v2107 = vsub.f32 %v2015, %v2075
      %v2108 = vsub.f32 %v2020, %v2076
      %v2109 = vsub.f32 %v2025, %v2077
      %v2110 = vsub.f32 %v2030, %v2078
      %v2111 = vsub.f32 %v2035, %v2079
      %v2112 = vsub.f32 %v2040, %v2080
      %v2113 = vsub.f32 %v2045, %v2081
      %v2114 = vsub.f32 %v2050, %v2082
      %v2115 = vmul.f32 %v2083, 0.00390625
      %v2116 = vmul.f32 %v2084, 0.00390625
      %v2117 = vmul.f32 %v2085, 0.00390625
      %v2118 = vmul.f32 %v2086, 0.00390625
      %v2119 = vmul.f32 %v2087, 0.00390625
      %v2120 = vmul.f32 %v2088, 0.00390625
      %v2121 = vmul.f32 %v2089, 0.00390625
      %v2122 = vmul.f32 %v2090, 0.00390625
      %v2123 = vmul.f32 %v2091, 0.00390625
      %v2124 = vmul.f32 %v2092, 0.00390625
      %v2125 = vmul.f32 %v2093, 0.00390625
      %v2126 = vmul.f32 %v2094, 0.00390625
      %v2127 = vmul.f32 %v2095, 0.00390625
      %v2128 = vmul.f32 %v2096, 0.00390625
      %v2129 = vmul.f32 %v2097, 0.00390625
      %v2130 = vmul.f32 %v2098, 0.00390625
      %v2131 = vmul.f32 %v2099, 0.00390625
      %v2132 = vmul.f32 %v2100, 0.00390625
      %v2133 = vmul.f32 %v2101, 0.00390625
      %v2134 = vmul.f32 %v2102, 0.00390625
      %v2135 = vmul.f32 %v2103, 0.00390625
      %v2136 = vmul.f32 %v2104, 0.00390625
      %v2137 = vmul.f32 %v2105, 0.00390625
      %v2138 = vmul.f32 %v2106, 0.00390625
      %v2139 = vmul.f32 %v2107, 0.00390625
      %v2140 = vmul.f32 %v2108, 0.00390625
      %v2141 = vmul.f32 %v2109, 0.00390625
      %v2142 = vmul.f32 %v2110, 0.00390625
      %v2143 = vmul.f32 %v2111, 0.00390625
      %v2144 = vmul.f32 %v2112, 0.00390625
      %v2145 = vmul.f32 %v2113, 0.00390625
      %v2146 = vmul.f32 %v2114, 0.00390625
      %v2147 = vld [vmem:[%s6] sm:$0xff]
      %v2148 = vld [vmem:[%s6 + $0x8] sm:$0xff]
      %v2149 = vld [vmem:[%s6 + $0x10] sm:$0xff]
      %v2150 = vld [vmem:[%s6 + $0x18] sm:$0xff]
      %v2151 = vld [vmem:[%s6 + $0x20] sm:$0xff]
      %v2152 = vld [vmem:[%s6 + $0x28] sm:$0xff]
      %v2153 = vld [vmem:[%s6 + $0x30] sm:$0xff]
      %v2154 = vld [vmem:[%s6 + $0x38] sm:$0xff]
      %v2155 = vld [vmem:[%s6 + $0x40] sm:$0xff]
      %v2156 = vld [vmem:[%s6 + $0x48] sm:$0xff]
      %v2157 = vld [vmem:[%s6 + $0x50] sm:$0xff]
      %v2158 = vld [vmem:[%s6 + $0x58] sm:$0xff]
      %v2159 = vld [vmem:[%s6 + $0x60] sm:$0xff]
      %v2160 = vld [vmem:[%s6 + $0x68] sm:$0xff]
      %v2161 = vld [vmem:[%s6 + $0x70] sm:$0xff]
      %v2162 = vld [vmem:[%s6 + $0x78] sm:$0xff]
      %v2163 = vld [vmem:[%s6 + $0x80] sm:$0xff]
      %v2164 = vld [vmem:[%s6 + $0x88] sm:$0xff]
      %v2165 = vld [vmem:[%s6 + $0x90] sm:$0xff]
      %v2166 = vld [vmem:[%s6 + $0x98] sm:$0xff]
      %v2167 = vld [vmem:[%s6 + $0xa0] sm:$0xff]
      %v2168 = vld [vmem:[%s6 + $0xa8] sm:$0xff]
      %v2169 = vld [vmem:[%s6 + $0xb0] sm:$0xff]
      %v2170 = vld [vmem:[%s6 + $0xb8] sm:$0xff]
      %v2171 = vld [vmem:[%s6 + $0xc0] sm:$0xff]
      %v2172 = vld [vmem:[%s6 + $0xc8] sm:$0xff]
      %v2173 = vld [vmem:[%s6 + $0xd0] sm:$0xff]
      %v2174 = vld [vmem:[%s6 + $0xd8] sm:$0xff]
      %v2175 = vld [vmem:[%s6 + $0xe0] sm:$0xff]
      %v2176 = vld [vmem:[%s6 + $0xe8] sm:$0xff]
      %v2177 = vld [vmem:[%s6 + $0xf0] sm:$0xff]
      %v2178 = vld [vmem:[%s6 + $0xf8] sm:$0xff]
      %v2179 = vmul.f32 %v2147, %v2115
      %v2180 = vmul.f32 %v2148, %v2116
      %v2181 = vmul.f32 %v2149, %v2117
      %v2182 = vmul.f32 %v2150, %v2118
      %v2183 = vmul.f32 %v2151, %v2119
      %v2184 = vmul.f32 %v2152, %v2120
      %v2185 = vmul.f32 %v2153, %v2121
      %v2186 = vmul.f32 %v2154, %v2122
      %v2187 = vmul.f32 %v2155, %v2123
      %v2188 = vmul.f32 %v2156, %v2124
      %v2189 = vmul.f32 %v2157, %v2125
      %v2190 = vmul.f32 %v2158, %v2126
      %v2191 = vmul.f32 %v2159, %v2127
      %v2192 = vmul.f32 %v2160, %v2128
      %v2193 = vmul.f32 %v2161, %v2129
      %v2194 = vmul.f32 %v2162, %v2130
      %v2195 = vmul.f32 %v2163, %v2131
      %v2196 = vmul.f32 %v2164, %v2132
      %v2197 = vmul.f32 %v2165, %v2133
      %v2198 = vmul.f32 %v2166, %v2134
      %v2199 = vmul.f32 %v2167, %v2135
      %v2200 = vmul.f32 %v2168, %v2136
      %v2201 = vmul.f32 %v2169, %v2137
      %v2202 = vmul.f32 %v2170, %v2138
      %v2203 = vmul.f32 %v2171, %v2139
      %v2204 = vmul.f32 %v2172, %v2140
      %v2205 = vmul.f32 %v2173, %v2141
      %v2206 = vmul.f32 %v2174, %v2142
      %v2207 = vmul.f32 %v2175, %v2143
      %v2208 = vmul.f32 %v2176, %v2144
      %v2209 = vmul.f32 %v2177, %v2145
      %v2210 = vmul.f32 %v2178, %v2146
      %vm2211 = vcmask 7168
      %v2212 = vsel %vm2211, %v2179, 0.0
      %v2213 = vsel %vm2211, %v2180, 0.0
      %v2214 = vadd.f32 %v2212, %v2213
      %v2215 = vsel %vm2211, %v2181, 0.0
      %v2216 = vadd.f32 %v2214, %v2215
      %v2217 = vsel %vm2211, %v2182, 0.0
      %v2218 = vadd.f32 %v2216, %v2217
      %v2219 = vsel %vm2211, %v2183, 0.0
      %v2220 = vadd.f32 %v2218, %v2219
      %v2221 = vsel %vm2211, %v2184, 0.0
      %v2222 = vadd.f32 %v2220, %v2221
      %v2223 = vsel %vm2211, %v2185, 0.0
      %v2224 = vadd.f32 %v2222, %v2223
      %v2225 = vsel %vm2211, %v2186, 0.0
      %v2226 = vadd.f32 %v2224, %v2225
      %v2227 = vsel %vm2211, %v2187, 0.0
      %v2228 = vadd.f32 %v2226, %v2227
      %v2229 = vsel %vm2211, %v2188, 0.0
      %v2230 = vadd.f32 %v2228, %v2229
      %v2231 = vsel %vm2211, %v2189, 0.0
      %v2232 = vadd.f32 %v2230, %v2231
      %v2233 = vsel %vm2211, %v2190, 0.0
      %v2234 = vadd.f32 %v2232, %v2233
      %v2235 = vsel %vm2211, %v2191, 0.0
      %v2236 = vadd.f32 %v2234, %v2235
      %v2237 = vsel %vm2211, %v2192, 0.0
      %v2238 = vadd.f32 %v2236, %v2237
      %v2239 = vsel %vm2211, %v2193, 0.0
      %v2240 = vadd.f32 %v2238, %v2239
      %v2241 = vsel %vm2211, %v2194, 0.0
      %v2242 = vadd.f32 %v2240, %v2241
      %v2243 = vsel %vm2211, %v2195, 0.0
      %v2244 = vadd.f32 %v2242, %v2243
      %v2245 = vsel %vm2211, %v2196, 0.0
      %v2246 = vadd.f32 %v2244, %v2245
      %v2247 = vsel %vm2211, %v2197, 0.0
      %v2248 = vadd.f32 %v2246, %v2247
      %v2249 = vsel %vm2211, %v2198, 0.0
      %v2250 = vadd.f32 %v2248, %v2249
      %v2251 = vsel %vm2211, %v2199, 0.0
      %v2252 = vadd.f32 %v2250, %v2251
      %v2253 = vsel %vm2211, %v2200, 0.0
      %v2254 = vadd.f32 %v2252, %v2253
      %v2255 = vsel %vm2211, %v2201, 0.0
      %v2256 = vadd.f32 %v2254, %v2255
      %v2257 = vsel %vm2211, %v2202, 0.0
      %v2258 = vadd.f32 %v2256, %v2257
      %v2259 = vsel %vm2211, %v2203, 0.0
      %v2260 = vadd.f32 %v2258, %v2259
      %v2261 = vsel %vm2211, %v2204, 0.0
      %v2262 = vadd.f32 %v2260, %v2261
      %v2263 = vsel %vm2211, %v2205, 0.0
      %v2264 = vadd.f32 %v2262, %v2263
      %v2265 = vsel %vm2211, %v2206, 0.0
      %v2266 = vadd.f32 %v2264, %v2265
      %v2267 = vsel %vm2211, %v2207, 0.0
      %v2268 = vadd.f32 %v2266, %v2267
      %v2269 = vsel %vm2211, %v2208, 0.0
      %v2270 = vadd.f32 %v2268, %v2269
      %v2271 = vsel %vm2211, %v2209, 0.0
      %v2272 = vadd.f32 %v2270, %v2271
      %v2273 = vsel %vm2211, %v2210, 0.0
      %v2274 = vadd.f32 %v2272, %v2273
      %v2275 = vrot.slane %v2274, 4
      %v2276 = vadd.f32 %v2274, %v2275
      %v2277 = vrot.slane %v2276, 2
      %v2278 = vadd.f32 %v2276, %v2277
      %v2279 = vrot.slane %v2278, 1
      %v2280 = vadd.f32 %v2278, %v2279
      %v2281 = vld [vmem:[#allocation2] sm:$0x1]
      %v2282 = vadd.f32 %v2280, %v2281
      %v2283 = vmax.f32 %v2282, 0.0
      %v2284 = vld [vmem:[%s8] sm:$0xff]
      %v2285 = vld [vmem:[%s8 + $0x8] sm:$0xff]
      %v2286 = vld [vmem:[%s8 + $0x10] sm:$0xff]
      %v2287 = vld [vmem:[%s8 + $0x18] sm:$0xff]
      %v2288 = vld [vmem:[%s8 + $0x20] sm:$0xff]
      %v2289 = vld [vmem:[%s8 + $0x28] sm:$0xff]
      %v2290 = vld [vmem:[%s8 + $0x30] sm:$0xff]
      %v2291 = vld [vmem:[%s8 + $0x38] sm:$0xff]
      %v2292 = vld [vmem:[%s8 + $0x40] sm:$0xff]
      %v2293 = vld [vmem:[%s8 + $0x48] sm:$0xff]
      %v2294 = vld [vmem:[%s8 + $0x50] sm:$0xff]
      %v2295 = vld [vmem:[%s8 + $0x58] sm:$0xff]
      %v2296 = vld [vmem:[%s8 + $0x60] sm:$0xff]
      %v2297 = vld [vmem:[%s8 + $0x68] sm:$0xff]
      %v2298 = vld [vmem:[%s8 + $0x70] sm:$0xff]
      %v2299 = vld [vmem:[%s8 + $0x78] sm:$0xff]
      %v2300 = vld [vmem:[%s8 + $0x80] sm:$0xff]
      %v2301 = vld [vmem:[%s8 + $0x88] sm:$0xff]
      %v2302 = vld [vmem:[%s8 + $0x90] sm:$0xff]
      %v2303 = vld [vmem:[%s8 + $0x98] sm:$0xff]
      %v2304 = vld [vmem:[%s8 + $0xa0] sm:$0xff]
      %v2305 = vld [vmem:[%s8 + $0xa8] sm:$0xff]
      %v2306 = vld [vmem:[%s8 + $0xb0] sm:$0xff]
      %v2307 = vld [vmem:[%s8 + $0xb8] sm:$0xff]
      %v2308 = vld [vmem:[%s8 + $0xc0] sm:$0xff]
      %v2309 = vld [vmem:[%s8 + $0xc8] sm:$0xff]
      %v2310 = vld [vmem:[%s8 + $0xd0] sm:$0xff]
      %v2311 = vld [vmem:[%s8 + $0xd8] sm:$0xff]
      %v2312 = vld [vmem:[%s8 + $0xe0] sm:$0xff]
      %v2313 = vld [vmem:[%s8 + $0xe8] sm:$0xff]
      %v2314 = vld [vmem:[%s8 + $0xf0] sm:$0xff]
      %v2315 = vld [vmem:[%s8 + $0xf8] sm:$0xff]
      %v2316 = vlaneseq
      %v2317 = vshrl.u32 %v2316, 7
      %v2318 = vsub.s32 0, %v2317
      %v2319 = vrot.slane %v2283, %v2318
      %v2320 = vmul.f32 %v2284, %v2319
      %v2321 = vmul.f32 %v2285, %v2319
      %v2322 = vmul.f32 %v2286, %v2319
      %v2323 = vmul.f32 %v2287, %v2319
      %v2324 = vmul.f32 %v2288, %v2319
      %v2325 = vmul.f32 %v2289, %v2319
      %v2326 = vmul.f32 %v2290, %v2319
      %v2327 = vmul.f32 %v2291, %v2319
      %v2328 = vmul.f32 %v2292, %v2319
      %v2329 = vmul.f32 %v2293, %v2319
      %v2330 = vmul.f32 %v2294, %v2319
      %v2331 = vmul.f32 %v2295, %v2319
      %v2332 = vmul.f32 %v2296, %v2319
      %v2333 = vmul.f32 %v2297, %v2319
      %v2334 = vmul.f32 %v2298, %v2319
      %v2335 = vmul.f32 %v2299, %v2319
      %v2336 = vmul.f32 %v2300, %v2319
      %v2337 = vmul.f32 %v2301, %v2319
      %v2338 = vmul.f32 %v2302, %v2319
      %v2339 = vmul.f32 %v2303, %v2319
      %v2340 = vmul.f32 %v2304, %v2319
      %v2341 = vmul.f32 %v2305, %v2319
      %v2342 = vmul.f32 %v2306, %v2319
      %v2343 = vmul.f32 %v2307, %v2319
      %v2344 = vmul.f32 %v2308, %v2319
      %v2345 = vmul.f32 %v2309, %v2319
      %v2346 = vmul.f32 %v2310, %v2319
      %v2347 = vmul.f32 %v2311, %v2319
      %v2348 = vmul.f32 %v2312, %v2319
      %v2349 = vmul.f32 %v2313, %v2319
      %v2350 = vmul.f32 %v2314, %v2319
      %v2351 = vmul.f32 %v2315, %v2319
      %v2352 = vadd.f32 %v2320, 0.0
      %v2353 = vadd.f32 %v2321, 0.0
      %v2354 = vadd.f32 %v2322, 0.0
      %v2355 = vadd.f32 %v2323, 0.0
      %v2356 = vadd.f32 %v2324, 0.0
      %v2357 = vadd.f32 %v2325, 0.0
      %v2358 = vadd.f32 %v2326, 0.0
      %v2359 = vadd.f32 %v2327, 0.0
      %v2360 = vadd.f32 %v2328, 0.0
      %v2361 = vadd.f32 %v2329, 0.0
      %v2362 = vadd.f32 %v2330, 0.0
      %v2363 = vadd.f32 %v2331, 0.0
      %v2364 = vadd.f32 %v2332, 0.0
      %v2365 = vadd.f32 %v2333, 0.0
      %v2366 = vadd.f32 %v2334, 0.0
      %v2367 = vadd.f32 %v2335, 0.0
      %v2368 = vadd.f32 %v2336, 0.0
      %v2369 = vadd.f32 %v2337, 0.0
      %v2370 = vadd.f32 %v2338, 0.0
      %v2371 = vadd.f32 %v2339, 0.0
      %v2372 = vadd.f32 %v2340, 0.0
      %v2373 = vadd.f32 %v2341, 0.0
      %v2374 = vadd.f32 %v2342, 0.0
      %v2375 = vadd.f32 %v2343, 0.0
      %v2376 = vadd.f32 %v2344, 0.0
      %v2377 = vadd.f32 %v2345, 0.0
      %v2378 = vadd.f32 %v2346, 0.0
      %v2379 = vadd.f32 %v2347, 0.0
      %v2380 = vadd.f32 %v2348, 0.0
      %v2381 = vadd.f32 %v2349, 0.0
      %v2382 = vadd.f32 %v2350, 0.0
      %v2383 = vadd.f32 %v2351, 0.0
      %v2384 = vld [vmem:[%s9] sm:$0xff]
      %v2385 = vld [vmem:[%s9 + $0x8] sm:$0xff]
      %v2386 = vld [vmem:[%s9 + $0x10] sm:$0xff]
      %v2387 = vld [vmem:[%s9 + $0x18] sm:$0xff]
      %v2388 = vld [vmem:[%s9 + $0x20] sm:$0xff]
      %v2389 = vld [vmem:[%s9 + $0x28] sm:$0xff]
      %v2390 = vld [vmem:[%s9 + $0x30] sm:$0xff]
      %v2391 = vld [vmem:[%s9 + $0x38] sm:$0xff]
      %v2392 = vld [vmem:[%s9 + $0x40] sm:$0xff]
      %v2393 = vld [vmem:[%s9 + $0x48] sm:$0xff]
      %v2394 = vld [vmem:[%s9 + $0x50] sm:$0xff]
      %v2395 = vld [vmem:[%s9 + $0x58] sm:$0xff]
      %v2396 = vld [vmem:[%s9 + $0x60] sm:$0xff]
      %v2397 = vld [vmem:[%s9 + $0x68] sm:$0xff]
      %v2398 = vld [vmem:[%s9 + $0x70] sm:$0xff]
      %v2399 = vld [vmem:[%s9 + $0x78] sm:$0xff]
      %v2400 = vld [vmem:[%s9 + $0x80] sm:$0xff]
      %v2401 = vld [vmem:[%s9 + $0x88] sm:$0xff]
      %v2402 = vld [vmem:[%s9 + $0x90] sm:$0xff]
      %v2403 = vld [vmem:[%s9 + $0x98] sm:$0xff]
      %v2404 = vld [vmem:[%s9 + $0xa0] sm:$0xff]
      %v2405 = vld [vmem:[%s9 + $0xa8] sm:$0xff]
      %v2406 = vld [vmem:[%s9 + $0xb0] sm:$0xff]
      %v2407 = vld [vmem:[%s9 + $0xb8] sm:$0xff]
      %v2408 = vld [vmem:[%s9 + $0xc0] sm:$0xff]
      %v2409 = vld [vmem:[%s9 + $0xc8] sm:$0xff]
      %v2410 = vld [vmem:[%s9 + $0xd0] sm:$0xff]
      %v2411 = vld [vmem:[%s9 + $0xd8] sm:$0xff]
      %v2412 = vld [vmem:[%s9 + $0xe0] sm:$0xff]
      %v2413 = vld [vmem:[%s9 + $0xe8] sm:$0xff]
      %v2414 = vld [vmem:[%s9 + $0xf0] sm:$0xff]
      %v2415 = vld [vmem:[%s9 + $0xf8] sm:$0xff]
      %v2416 = vadd.f32 %v2352, %v2384
      %v2417 = vadd.f32 %v2353, %v2385
      %v2418 = vadd.f32 %v2354, %v2386
      %v2419 = vadd.f32 %v2355, %v2387
      %v2420 = vadd.f32 %v2356, %v2388
      %v2421 = vadd.f32 %v2357, %v2389
      %v2422 = vadd.f32 %v2358, %v2390
      %v2423 = vadd.f32 %v2359, %v2391
      %v2424 = vadd.f32 %v2360, %v2392
      %v2425 = vadd.f32 %v2361, %v2393
      %v2426 = vadd.f32 %v2362, %v2394
      %v2427 = vadd.f32 %v2363, %v2395
      %v2428 = vadd.f32 %v2364, %v2396
      %v2429 = vadd.f32 %v2365, %v2397
      %v2430 = vadd.f32 %v2366, %v2398
      %v2431 = vadd.f32 %v2367, %v2399
      %v2432 = vadd.f32 %v2368, %v2400
      %v2433 = vadd.f32 %v2369, %v2401
      %v2434 = vadd.f32 %v2370, %v2402
      %v2435 = vadd.f32 %v2371, %v2403
      %v2436 = vadd.f32 %v2372, %v2404
      %v2437 = vadd.f32 %v2373, %v2405
      %v2438 = vadd.f32 %v2374, %v2406
      %v2439 = vadd.f32 %v2375, %v2407
      %v2440 = vadd.f32 %v2376, %v2408
      %v2441 = vadd.f32 %v2377, %v2409
      %v2442 = vadd.f32 %v2378, %v2410
      %v2443 = vadd.f32 %v2379, %v2411
      %v2444 = vadd.f32 %v2380, %v2412
      %v2445 = vadd.f32 %v2381, %v2413
      %v2446 = vadd.f32 %v2382, %v2414
      %v2447 = vadd.f32 %v2383, %v2415
      %v2448 = vxor.u32 %v2416, 2147483648
      %v2449 = vxor.u32 %v2417, 2147483648
      %v2450 = vxor.u32 %v2418, 2147483648
      %v2451 = vxor.u32 %v2419, 2147483648
      %v2452 = vxor.u32 %v2420, 2147483648
      %v2453 = vxor.u32 %v2421, 2147483648
      %v2454 = vxor.u32 %v2422, 2147483648
      %v2455 = vxor.u32 %v2423, 2147483648
      %v2456 = vxor.u32 %v2424, 2147483648
      %v2457 = vxor.u32 %v2425, 2147483648
      %v2458 = vxor.u32 %v2426, 2147483648
      %v2459 = vxor.u32 %v2427, 2147483648
      %v2460 = vxor.u32 %v2428, 2147483648
      %v2461 = vxor.u32 %v2429, 2147483648
      %v2462 = vxor.u32 %v2430, 2147483648
      %v2463 = vxor.u32 %v2431, 2147483648
      %v2464 = vxor.u32 %v2432, 2147483648
      %v2465 = vxor.u32 %v2433, 2147483648
      %v2466 = vxor.u32 %v2434, 2147483648
      %v2467 = vxor.u32 %v2435, 2147483648
      %v2468 = vxor.u32 %v2436, 2147483648
      %v2469 = vxor.u32 %v2437, 2147483648
      %v2470 = vxor.u32 %v2438, 2147483648
      %v2471 = vxor.u32 %v2439, 2147483648
      %v2472 = vxor.u32 %v2440, 2147483648
      %v2473 = vxor.u32 %v2441, 2147483648
      %v2474 = vxor.u32 %v2442, 2147483648
      %v2475 = vxor.u32 %v2443, 2147483648
      %v2476 = vxor.u32 %v2444, 2147483648
      %v2477 = vxor.u32 %v2445, 2147483648
      %v2478 = vxor.u32 %v2446, 2147483648
      %v2479 = vxor.u32 %v2447, 2147483648
      %v2480 = vmul.f32 %v2448, 1.442695
      %v2481 = vpow.pop %v2480
      %v2482 = vmul.f32 %v2449, 1.442695
      %v2483 = vpow.pop %v2482
      %v2484 = vmul.f32 %v2450, 1.442695
      %v2485 = vpow.pop %v2484
      %v2486 = vmul.f32 %v2451, 1.442695
      %v2487 = vpow.pop %v2486
      %v2488 = vmul.f32 %v2452, 1.442695
      %v2489 = vpow.pop %v2488
      %v2490 = vmul.f32 %v2453, 1.442695
      %v2491 = vpow.pop %v2490
      %v2492 = vmul.f32 %v2454, 1.442695
      %v2493 = vpow.pop %v2492
      %v2494 = vmul.f32 %v2455, 1.442695
      %v2495 = vpow.pop %v2494
      %v2496 = vmul.f32 %v2456, 1.442695
      %v2497 = vpow.pop %v2496
      %v2498 = vmul.f32 %v2457, 1.442695
      %v2499 = vpow.pop %v2498
      %v2500 = vmul.f32 %v2458, 1.442695
      %v2501 = vpow.pop %v2500
      %v2502 = vmul.f32 %v2459, 1.442695
      %v2503 = vpow.pop %v2502
      %v2504 = vmul.f32 %v2460, 1.442695
      %v2505 = vpow.pop %v2504
      %v2506 = vmul.f32 %v2461, 1.442695
      %v2507 = vpow.pop %v2506
      %v2508 = vmul.f32 %v2462, 1.442695
      %v2509 = vpow.pop %v2508
      %v2510 = vmul.f32 %v2463, 1.442695
      %v2511 = vpow.pop %v2510
      %v2512 = vmul.f32 %v2464, 1.442695
      %v2513 = vpow.pop %v2512
      %v2514 = vmul.f32 %v2465, 1.442695
      %v2515 = vpow.pop %v2514
      %v2516 = vmul.f32 %v2466, 1.442695
      %v2517 = vpow.pop %v2516
      %v2518 = vmul.f32 %v2467, 1.442695
      %v2519 = vpow.pop %v2518
      %v2520 = vmul.f32 %v2468, 1.442695
      %v2521 = vpow.pop %v2520
      %v2522 = vmul.f32 %v2469, 1.442695
      %v2523 = vpow.pop %v2522
      %v2524 = vmul.f32 %v2470, 1.442695
      %v2525 = vpow.pop %v2524
      %v2526 = vmul.f32 %v2471, 1.442695
      %v2527 = vpow.pop %v2526
      %v2528 = vmul.f32 %v2472, 1.442695
      %v2529 = vpow.pop %v2528
      %v2530 = vmul.f32 %v2473, 1.442695
      %v2531 = vpow.pop %v2530
      %v2532 = vmul.f32 %v2474, 1.442695
      %v2533 = vpow.pop %v2532
      %v2534 = vmul.f32 %v2475, 1.442695
      %v2535 = vpow.pop %v2534
      %v2536 = vmul.f32 %v2476, 1.442695
      %v2537 = vpow.pop %v2536
      %v2538 = vmul.f32 %v2477, 1.442695
      %v2539 = vpow.pop %v2538
      %v2540 = vmul.f32 %v2478, 1.442695
      %v2541 = vpow.pop %v2540
      %v2542 = vmul.f32 %v2479, 1.442695
      %v2543 = vpow.pop %v2542
      %v2544 = vadd.f32 %v2481, 1.0
      %v2545 = vadd.f32 %v2483, 1.0
      %v2546 = vadd.f32 %v2485, 1.0
      %v2547 = vadd.f32 %v2487, 1.0
      %v2548 = vadd.f32 %v2489, 1.0
      %v2549 = vadd.f32 %v2491, 1.0
      %v2550 = vadd.f32 %v2493, 1.0
      %v2551 = vadd.f32 %v2495, 1.0
      %v2552 = vadd.f32 %v2497, 1.0
      %v2553 = vadd.f32 %v2499, 1.0
      %v2554 = vadd.f32 %v2501, 1.0
      %v2555 = vadd.f32 %v2503, 1.0
      %v2556 = vadd.f32 %v2505, 1.0
      %v2557 = vadd.f32 %v2507, 1.0
      %v2558 = vadd.f32 %v2509, 1.0
      %v2559 = vadd.f32 %v2511, 1.0
      %v2560 = vadd.f32 %v2513, 1.0
      %v2561 = vadd.f32 %v2515, 1.0
      %v2562 = vadd.f32 %v2517, 1.0
      %v2563 = vadd.f32 %v2519, 1.0
      %v2564 = vadd.f32 %v2521, 1.0
      %v2565 = vadd.f32 %v2523, 1.0
      %v2566 = vadd.f32 %v2525, 1.0
      %v2567 = vadd.f32 %v2527, 1.0
      %v2568 = vadd.f32 %v2529, 1.0
      %v2569 = vadd.f32 %v2531, 1.0
      %v2570 = vadd.f32 %v2533, 1.0
      %v2571 = vadd.f32 %v2535, 1.0
      %v2572 = vadd.f32 %v2537, 1.0
      %v2573 = vadd.f32 %v2539, 1.0
      %v2574 = vadd.f32 %v2541, 1.0
      %v2575 = vadd.f32 %v2543, 1.0
      %v2576 = vrcp.pop %v2544
      %v2577 = vmul.f32 1.0, %v2576
      %v2578 = vrcp.pop %v2545
      %v2579 = vmul.f32 1.0, %v2578
      %v2580 = vrcp.pop %v2546
      %v2581 = vmul.f32 1.0, %v2580
      %v2582 = vrcp.pop %v2547
      %v2583 = vmul.f32 1.0, %v2582
      %v2584 = vrcp.pop %v2548
      %v2585 = vmul.f32 1.0, %v2584
      %v2586 = vrcp.pop %v2549
      %v2587 = vmul.f32 1.0, %v2586
      %v2588 = vrcp.pop %v2550
      %v2589 = vmul.f32 1.0, %v2588
      %v2590 = vrcp.pop %v2551
      %v2591 = vmul.f32 1.0, %v2590
      %v2592 = vrcp.pop %v2552
      %v2593 = vmul.f32 1.0, %v2592
      %v2594 = vrcp.pop %v2553
      %v2595 = vmul.f32 1.0, %v2594
      %v2596 = vrcp.pop %v2554
      %v2597 = vmul.f32 1.0, %v2596
      %v2598 = vrcp.pop %v2555
      %v2599 = vmul.f32 1.0, %v2598
      %v2600 = vrcp.pop %v2556
      %v2601 = vmul.f32 1.0, %v2600
      %v2602 = vrcp.pop %v2557
      %v2603 = vmul.f32 1.0, %v2602
      %v2604 = vrcp.pop %v2558
      %v2605 = vmul.f32 1.0, %v2604
      %v2606 = vrcp.pop %v2559
      %v2607 = vmul.f32 1.0, %v2606
      %v2608 = vrcp.pop %v2560
      %v2609 = vmul.f32 1.0, %v2608
      %v2610 = vrcp.pop %v2561
      %v2611 = vmul.f32 1.0, %v2610
      %v2612 = vrcp.pop %v2562
      %v2613 = vmul.f32 1.0, %v2612
      %v2614 = vrcp.pop %v2563
      %v2615 = vmul.f32 1.0, %v2614
      %v2616 = vrcp.pop %v2564
      %v2617 = vmul.f32 1.0, %v2616
      %v2618 = vrcp.pop %v2565
      %v2619 = vmul.f32 1.0, %v2618
      %v2620 = vrcp.pop %v2566
      %v2621 = vmul.f32 1.0, %v2620
      %v2622 = vrcp.pop %v2567
      %v2623 = vmul.f32 1.0, %v2622
      %v2624 = vrcp.pop %v2568
      %v2625 = vmul.f32 1.0, %v2624
      %v2626 = vrcp.pop %v2569
      %v2627 = vmul.f32 1.0, %v2626
      %v2628 = vrcp.pop %v2570
      %v2629 = vmul.f32 1.0, %v2628
      %v2630 = vrcp.pop %v2571
      %v2631 = vmul.f32 1.0, %v2630
      %v2632 = vrcp.pop %v2572
      %v2633 = vmul.f32 1.0, %v2632
      %v2634 = vrcp.pop %v2573
      %v2635 = vmul.f32 1.0, %v2634
      %v2636 = vrcp.pop %v2574
      %v2637 = vmul.f32 1.0, %v2636
      %v2638 = vrcp.pop %v2575
      %v2639 = vmul.f32 1.0, %v2638
      %2641 = vset.pattern.permute.xlu0 0
      %2642 = vperm.xlu0 %2641, %v2577
      %v2643 = vpop.permute.xlu0 %2642
      %2646 = vset.pattern.permute.xlu0 0
      %2647 = vperm.xlu0 %2646, %v2579
      %v2648 = vpop.permute.xlu0 %2647
      %2651 = vset.pattern.permute.xlu0 0
      %2652 = vperm.xlu0 %2651, %v2581
      %v2653 = vpop.permute.xlu0 %2652
      %2656 = vset.pattern.permute.xlu0 0
      %2657 = vperm.xlu0 %2656, %v2583
      %v2658 = vpop.permute.xlu0 %2657
      %2661 = vset.pattern.permute.xlu0 0
      %2662 = vperm.xlu0 %2661, %v2585
      %v2663 = vpop.permute.xlu0 %2662
      %2666 = vset.pattern.permute.xlu0 0
      %2667 = vperm.xlu0 %2666, %v2587
      %v2668 = vpop.permute.xlu0 %2667
      %2671 = vset.pattern.permute.xlu0 0
      %2672 = vperm.xlu0 %2671, %v2589
      %v2673 = vpop.permute.xlu0 %2672
      %2676 = vset.pattern.permute.xlu0 0
      %2677 = vperm.xlu0 %2676, %v2591
      %v2678 = vpop.permute.xlu0 %2677
      %2681 = vset.pattern.permute.xlu0 0
      %2682 = vperm.xlu0 %2681, %v2593
      %v2683 = vpop.permute.xlu0 %2682
      %2686 = vset.pattern.permute.xlu0 0
      %2687 = vperm.xlu0 %2686, %v2595
      %v2688 = vpop.permute.xlu0 %2687
      %2691 = vset.pattern.permute.xlu0 0
      %2692 = vperm.xlu0 %2691, %v2597
      %v2693 = vpop.permute.xlu0 %2692
      %2696 = vset.pattern.permute.xlu0 0
      %2697 = vperm.xlu0 %2696, %v2599
      %v2698 = vpop.permute.xlu0 %2697
      %2701 = vset.pattern.permute.xlu0 0
      %2702 = vperm.xlu0 %2701, %v2601
      %v2703 = vpop.permute.xlu0 %2702
      %2706 = vset.pattern.permute.xlu0 0
      %2707 = vperm.xlu0 %2706, %v2603
      %v2708 = vpop.permute.xlu0 %2707
      %2711 = vset.pattern.permute.xlu0 0
      %2712 = vperm.xlu0 %2711, %v2605
      %v2713 = vpop.permute.xlu0 %2712
      %2716 = vset.pattern.permute.xlu0 0
      %2717 = vperm.xlu0 %2716, %v2607
      %v2718 = vpop.permute.xlu0 %2717
      %2721 = vset.pattern.permute.xlu0 0
      %2722 = vperm.xlu0 %2721, %v2609
      %v2723 = vpop.permute.xlu0 %2722
      %2726 = vset.pattern.permute.xlu0 0
      %2727 = vperm.xlu0 %2726, %v2611
      %v2728 = vpop.permute.xlu0 %2727
      %2731 = vset.pattern.permute.xlu0 0
      %2732 = vperm.xlu0 %2731, %v2613
      %v2733 = vpop.permute.xlu0 %2732
      %2736 = vset.pattern.permute.xlu0 0
      %2737 = vperm.xlu0 %2736, %v2615
      %v2738 = vpop.permute.xlu0 %2737
      %2741 = vset.pattern.permute.xlu0 0
      %2742 = vperm.xlu0 %2741, %v2617
      %v2743 = vpop.permute.xlu0 %2742
      %2746 = vset.pattern.permute.xlu0 0
      %2747 = vperm.xlu0 %2746, %v2619
      %v2748 = vpop.permute.xlu0 %2747
      %2751 = vset.pattern.permute.xlu0 0
      %2752 = vperm.xlu0 %2751, %v2621
      %v2753 = vpop.permute.xlu0 %2752
      %2756 = vset.pattern.permute.xlu0 0
      %2757 = vperm.xlu0 %2756, %v2623
      %v2758 = vpop.permute.xlu0 %2757
      %2761 = vset.pattern.permute.xlu0 0
      %2762 = vperm.xlu0 %2761, %v2625
      %v2763 = vpop.permute.xlu0 %2762
      %2766 = vset.pattern.permute.xlu0 0
      %2767 = vperm.xlu0 %2766, %v2627
      %v2768 = vpop.permute.xlu0 %2767
      %2771 = vset.pattern.permute.xlu0 0
      %2772 = vperm.xlu0 %2771, %v2629
      %v2773 = vpop.permute.xlu0 %2772
      %2776 = vset.pattern.permute.xlu0 0
      %2777 = vperm.xlu0 %2776, %v2631
      %v2778 = vpop.permute.xlu0 %2777
      %2781 = vset.pattern.permute.xlu0 0
      %2782 = vperm.xlu0 %2781, %v2633
      %v2783 = vpop.permute.xlu0 %2782
      %2786 = vset.pattern.permute.xlu0 0
      %2787 = vperm.xlu0 %2786, %v2635
      %v2788 = vpop.permute.xlu0 %2787
      %2791 = vset.pattern.permute.xlu0 0
      %2792 = vperm.xlu0 %2791, %v2637
      %v2793 = vpop.permute.xlu0 %2792
      %2796 = vset.pattern.permute.xlu0 0
      %2797 = vperm.xlu0 %2796, %v2639
      %v2798 = vpop.permute.xlu0 %2797
      %v2800 = vmul.f32 %v1730, %v2643
      %v2801 = vmul.f32 %v1731, %v2643
      %v2802 = vmul.f32 %v1732, %v2643
      %v2803 = vmul.f32 %v1733, %v2648
      %v2804 = vmul.f32 %v1734, %v2648
      %v2805 = vmul.f32 %v1735, %v2648
      %v2806 = vmul.f32 %v1736, %v2653
      %v2807 = vmul.f32 %v1737, %v2653
      %v2808 = vmul.f32 %v1738, %v2653
      %v2809 = vmul.f32 %v1739, %v2658
      %v2810 = vmul.f32 %v1740, %v2658
      %v2811 = vmul.f32 %v1741, %v2658
      %v2812 = vmul.f32 %v1742, %v2663
      %v2813 = vmul.f32 %v1743, %v2663
      %v2814 = vmul.f32 %v1744, %v2663
      %v2815 = vmul.f32 %v1745, %v2668
      %v2816 = vmul.f32 %v1746, %v2668
      %v2817 = vmul.f32 %v1747, %v2668
      %v2818 = vmul.f32 %v1748, %v2673
      %v2819 = vmul.f32 %v1749, %v2673
      %v2820 = vmul.f32 %v1750, %v2673
      %v2821 = vmul.f32 %v1751, %v2678
      %v2822 = vmul.f32 %v1752, %v2678
      %v2823 = vmul.f32 %v1753, %v2678
      %v2824 = vmul.f32 %v1754, %v2683
      %v2825 = vmul.f32 %v1755, %v2683
      %v2826 = vmul.f32 %v1756, %v2683
      %v2827 = vmul.f32 %v1757, %v2688
      %v2828 = vmul.f32 %v1758, %v2688
      %v2829 = vmul.f32 %v1759, %v2688
      %v2830 = vmul.f32 %v1760, %v2693
      %v2831 = vmul.f32 %v1761, %v2693
      %v2832 = vmul.f32 %v1762, %v2693
      %v2833 = vmul.f32 %v1763, %v2698
      %v2834 = vmul.f32 %v1764, %v2698
      %v2835 = vmul.f32 %v1765, %v2698
      %v2836 = vmul.f32 %v1766, %v2703
      %v2837 = vmul.f32 %v1767, %v2703
      %v2838 = vmul.f32 %v1768, %v2703
      %v2839 = vmul.f32 %v1769, %v2708
      %v2840 = vmul.f32 %v1770, %v2708
      %v2841 = vmul.f32 %v1771, %v2708
      %v2842 = vmul.f32 %v1772, %v2713
      %v2843 = vmul.f32 %v1773, %v2713
      %v2844 = vmul.f32 %v1774, %v2713
      %v2845 = vmul.f32 %v1775, %v2718
      %v2846 = vmul.f32 %v1776, %v2718
      %v2847 = vmul.f32 %v1777, %v2718
      %v2848 = vmul.f32 %v1778, %v2723
      %v2849 = vmul.f32 %v1779, %v2723
      %v2850 = vmul.f32 %v1780, %v2723
      %v2851 = vmul.f32 %v1781, %v2728
      %v2852 = vmul.f32 %v1782, %v2728
      %v2853 = vmul.f32 %v1783, %v2728
      %v2854 = vmul.f32 %v1784, %v2733
      %v2855 = vmul.f32 %v1785, %v2733
      %v2856 = vmul.f32 %v1786, %v2733
      %v2857 = vmul.f32 %v1787, %v2738
      %v2858 = vmul.f32 %v1788, %v2738
      %v2859 = vmul.f32 %v1789, %v2738
      %v2860 = vmul.f32 %v1790, %v2743
      %v2861 = vmul.f32 %v1791, %v2743
      %v2862 = vmul.f32 %v1792, %v2743
      %v2863 = vmul.f32 %v1793, %v2748
      %v2864 = vmul.f32 %v1794, %v2748
      %v2865 = vmul.f32 %v1795, %v2748
      %v2866 = vmul.f32 %v1796, %v2753
      %v2867 = vmul.f32 %v1797, %v2753
      %v2868 = vmul.f32 %v1798, %v2753
      %v2869 = vmul.f32 %v1799, %v2758
      %v2870 = vmul.f32 %v1800, %v2758
      %v2871 = vmul.f32 %v1801, %v2758
      %v2872 = vmul.f32 %v1802, %v2763
      %v2873 = vmul.f32 %v1803, %v2763
      %v2874 = vmul.f32 %v1804, %v2763
      %v2875 = vmul.f32 %v1805, %v2768
      %v2876 = vmul.f32 %v1806, %v2768
      %v2877 = vmul.f32 %v1807, %v2768
      %v2878 = vmul.f32 %v1808, %v2773
      %v2879 = vmul.f32 %v1809, %v2773
      %v2880 = vmul.f32 %v1810, %v2773
      %v2881 = vmul.f32 %v1811, %v2778
      %v2882 = vmul.f32 %v1812, %v2778
      %v2883 = vmul.f32 %v1813, %v2778
      %v2884 = vmul.f32 %v1814, %v2783
      %v2885 = vmul.f32 %v1815, %v2783
      %v2886 = vmul.f32 %v1816, %v2783
      %v2887 = vmul.f32 %v1817, %v2788
      %v2888 = vmul.f32 %v1818, %v2788
      %v2889 = vmul.f32 %v1819, %v2788
      %v2890 = vmul.f32 %v1820, %v2793
      %v2891 = vmul.f32 %v1821, %v2793
      %v2892 = vmul.f32 %v1822, %v2793
      %v2893 = vmul.f32 %v1823, %v2798
      %v2894 = vmul.f32 %v1824, %v2798
      %v2895 = vmul.f32 %v1825, %v2798
      %2896 = vst [vmem:[%s361] sm:$0xff] %v2800
      %2897 = vst [vmem:[%s361 + $0x8] sm:$0xff] %v2801
      %2898 = vst.msk [vmem:[%s361 + $0x10] sm:$0xff] %vm1891, %v2802
      %2899 = vst [vmem:[%s361 + $0x18] sm:$0xff] %v2803
      %2900 = vst [vmem:[%s361 + $0x20] sm:$0xff] %v2804
      %2901 = vst.msk [vmem:[%s361 + $0x28] sm:$0xff] %vm1891, %v2805
      %2902 = vst [vmem:[%s361 + $0x30] sm:$0xff] %v2806
      %2903 = vst [vmem:[%s361 + $0x38] sm:$0xff] %v2807
      %2904 = vst.msk [vmem:[%s361 + $0x40] sm:$0xff] %vm1891, %v2808
      %2905 = vst [vmem:[%s361 + $0x48] sm:$0xff] %v2809
      %2906 = vst [vmem:[%s361 + $0x50] sm:$0xff] %v2810
      %2907 = vst.msk [vmem:[%s361 + $0x58] sm:$0xff] %vm1891, %v2811
      %2908 = vst [vmem:[%s361 + $0x60] sm:$0xff] %v2812
      %2909 = vst [vmem:[%s361 + $0x68] sm:$0xff] %v2813
      %2910 = vst.msk [vmem:[%s361 + $0x70] sm:$0xff] %vm1891, %v2814
      %2911 = vst [vmem:[%s361 + $0x78] sm:$0xff] %v2815
      %2912 = vst [vmem:[%s361 + $0x80] sm:$0xff] %v2816
      %2913 = vst.msk [vmem:[%s361 + $0x88] sm:$0xff] %vm1891, %v2817
      %2914 = vst [vmem:[%s361 + $0x90] sm:$0xff] %v2818
      %2915 = vst [vmem:[%s361 + $0x98] sm:$0xff] %v2819
      %2916 = vst.msk [vmem:[%s361 + $0xa0] sm:$0xff] %vm1891, %v2820
      %2917 = vst [vmem:[%s361 + $0xa8] sm:$0xff] %v2821
      %2918 = vst [vmem:[%s361 + $0xb0] sm:$0xff] %v2822
      %2919 = vst.msk [vmem:[%s361 + $0xb8] sm:$0xff] %vm1891, %v2823
      %2920 = vst [vmem:[%s361 + $0xc0] sm:$0xff] %v2824
      %2921 = vst [vmem:[%s361 + $0xc8] sm:$0xff] %v2825
      %2922 = vst.msk [vmem:[%s361 + $0xd0] sm:$0xff] %vm1891, %v2826
      %2923 = vst [vmem:[%s361 + $0xd8] sm:$0xff] %v2827
      %2924 = vst [vmem:[%s361 + $0xe0] sm:$0xff] %v2828
      %2925 = vst.msk [vmem:[%s361 + $0xe8] sm:$0xff] %vm1891, %v2829
      %2926 = vst [vmem:[%s361 + $0xf0] sm:$0xff] %v2830
      %2927 = vst [vmem:[%s361 + $0xf8] sm:$0xff] %v2831
      %2928 = vst.msk [vmem:[%s361 + $0x100] sm:$0xff] %vm1891, %v2832
      %2929 = vst [vmem:[%s361 + $0x108] sm:$0xff] %v2833
      %2930 = vst [vmem:[%s361 + $0x110] sm:$0xff] %v2834
      %2931 = vst.msk [vmem:[%s361 + $0x118] sm:$0xff] %vm1891, %v2835
      %2932 = vst [vmem:[%s361 + $0x120] sm:$0xff] %v2836
      %2933 = vst [vmem:[%s361 + $0x128] sm:$0xff] %v2837
      %2934 = vst.msk [vmem:[%s361 + $0x130] sm:$0xff] %vm1891, %v2838
      %2935 = vst [vmem:[%s361 + $0x138] sm:$0xff] %v2839
      %2936 = vst [vmem:[%s361 + $0x140] sm:$0xff] %v2840
      %2937 = vst.msk [vmem:[%s361 + $0x148] sm:$0xff] %vm1891, %v2841
      %2938 = vst [vmem:[%s361 + $0x150] sm:$0xff] %v2842
      %2939 = vst [vmem:[%s361 + $0x158] sm:$0xff] %v2843
      %2940 = vst.msk [vmem:[%s361 + $0x160] sm:$0xff] %vm1891, %v2844
      %2941 = vst [vmem:[%s361 + $0x168] sm:$0xff] %v2845
      %2942 = vst [vmem:[%s361 + $0x170] sm:$0xff] %v2846
      %2943 = vst.msk [vmem:[%s361 + $0x178] sm:$0xff] %vm1891, %v2847
      %2944 = vst [vmem:[%s361 + $0x180] sm:$0xff] %v2848
      %2945 = vst [vmem:[%s361 + $0x188] sm:$0xff] %v2849
      %2946 = vst.msk [vmem:[%s361 + $0x190] sm:$0xff] %vm1891, %v2850
      %2947 = vst [vmem:[%s361 + $0x198] sm:$0xff] %v2851
      %2948 = vst [vmem:[%s361 + $0x1a0] sm:$0xff] %v2852
      %2949 = vst.msk [vmem:[%s361 + $0x1a8] sm:$0xff] %vm1891, %v2853
      %2950 = vst [vmem:[%s361 + $0x1b0] sm:$0xff] %v2854
      %2951 = vst [vmem:[%s361 + $0x1b8] sm:$0xff] %v2855
      %2952 = vst.msk [vmem:[%s361 + $0x1c0] sm:$0xff] %vm1891, %v2856
      %2953 = vst [vmem:[%s361 + $0x1c8] sm:$0xff] %v2857
      %2954 = vst [vmem:[%s361 + $0x1d0] sm:$0xff] %v2858
      %2955 = vst.msk [vmem:[%s361 + $0x1d8] sm:$0xff] %vm1891, %v2859
      %2956 = vst [vmem:[%s361 + $0x1e0] sm:$0xff] %v2860
      %2957 = vst [vmem:[%s361 + $0x1e8] sm:$0xff] %v2861
      %2958 = vst.msk [vmem:[%s361 + $0x1f0] sm:$0xff] %vm1891, %v2862
      %2959 = vst [vmem:[%s361 + $0x1f8] sm:$0xff] %v2863
      %2960 = vst [vmem:[%s361 + $0x200] sm:$0xff] %v2864
      %2961 = vst.msk [vmem:[%s361 + $0x208] sm:$0xff] %vm1891, %v2865
      %2962 = vst [vmem:[%s361 + $0x210] sm:$0xff] %v2866
      %2963 = vst [vmem:[%s361 + $0x218] sm:$0xff] %v2867
      %2964 = vst.msk [vmem:[%s361 + $0x220] sm:$0xff] %vm1891, %v2868
      %2965 = vst [vmem:[%s361 + $0x228] sm:$0xff] %v2869
      %2966 = vst [vmem:[%s361 + $0x230] sm:$0xff] %v2870
      %2967 = vst.msk [vmem:[%s361 + $0x238] sm:$0xff] %vm1891, %v2871
      %2968 = vst [vmem:[%s361 + $0x240] sm:$0xff] %v2872
      %2969 = vst [vmem:[%s361 + $0x248] sm:$0xff] %v2873
      %2970 = vst.msk [vmem:[%s361 + $0x250] sm:$0xff] %vm1891, %v2874
      %2971 = vst [vmem:[%s361 + $0x258] sm:$0xff] %v2875
      %2972 = vst [vmem:[%s361 + $0x260] sm:$0xff] %v2876
      %2973 = vst.msk [vmem:[%s361 + $0x268] sm:$0xff] %vm1891, %v2877
      %2974 = vst [vmem:[%s361 + $0x270] sm:$0xff] %v2878
      %2975 = vst [vmem:[%s361 + $0x278] sm:$0xff] %v2879
      %2976 = vst.msk [vmem:[%s361 + $0x280] sm:$0xff] %vm1891, %v2880
      %2977 = vst [vmem:[%s361 + $0x288] sm:$0xff] %v2881
      %2978 = vst [vmem:[%s361 + $0x290] sm:$0xff] %v2882
      %2979 = vst.msk [vmem:[%s361 + $0x298] sm:$0xff] %vm1891, %v2883
      %2980 = vst [vmem:[%s361 + $0x2a0] sm:$0xff] %v2884
      %2981 = vst [vmem:[%s361 + $0x2a8] sm:$0xff] %v2885
      %2982 = vst.msk [vmem:[%s361 + $0x2b0] sm:$0xff] %vm1891, %v2886
      %2983 = vst [vmem:[%s361 + $0x2b8] sm:$0xff] %v2887
      %2984 = vst [vmem:[%s361 + $0x2c0] sm:$0xff] %v2888
      %2985 = vst.msk [vmem:[%s361 + $0x2c8] sm:$0xff] %vm1891, %v2889
      %2986 = vst [vmem:[%s361 + $0x2d0] sm:$0xff] %v2890
      %2987 = vst [vmem:[%s361 + $0x2d8] sm:$0xff] %v2891
      %2988 = vst.msk [vmem:[%s361 + $0x2e0] sm:$0xff] %vm1891, %v2892
      %2989 = vst [vmem:[%s361 + $0x2e8] sm:$0xff] %v2893
      %2990 = vst [vmem:[%s361 + $0x2f0] sm:$0xff] %v2894
      %2991 = vst.msk [vmem:[%s361 + $0x2f8] sm:$0xff] %vm1891, %v2895
      %p2992 = scmp.lt.s32.totalorder %s23, 1
      %s2993 = scalar_select %p2992, %s23, 1
      %s2994 = smul.addr %s2993, 96
      %s2995 = smul.addr %s2994, 8
      %s2996 = scalar_lea.vmem %s10, %s2995
      // Predicated region
      $region61: #{depthwise_forward.1} parent=59 // pred_check
        %p2997 = pneg %p256
      $region62: #{depthwise_forward.1} parent=59 // pred_check_branch
        %2999 = sbr.rel (%p2997) target = $region64
      $region63: #{depthwise_forward.1} parent=59 // pred_region
        _
      $region64: #{depthwise_forward.1} parent=59 // pred_fallthru
        _
    $region60: #{depthwise_forward.1} parent=5 // pred_fallthru
      _
    %p3000 = scmp.le.s32.totalorder 2, %s18
    // Predicated region
    $region65: #{depthwise_forward.1} parent=5 // pred_check
      %p3001 = pneg %p3000
    $region66: #{depthwise_forward.1} parent=5 // pred_check_branch
      %3003 = sbr.rel (%p3001) target = $region68
    $region67: #{depthwise_forward.1} parent=5 // pred_region
      %s3004 = ssub.s32 %s18, 2
      // Predicated region
      $region69: #{depthwise_forward.1} parent=67 // pred_check
        %p3005 = pneg %p262
      $region70: #{depthwise_forward.1} parent=67 // pred_check_branch
        %3007 = sbr.rel (%p3005) target = $region72
      $region71: #{depthwise_forward.1} parent=67 // pred_region
        %p3008 = scmp.lt.s32.totalorder %s24, 1
        %s3009 = scalar_select %p3008, %s24, 1
        %s3010 = smul.addr %s3009, 96
        %s3011 = smul.addr %s3010, 8
        %s3012 = scalar_lea.vmem %s10, %s3011
      $region72: #{depthwise_forward.1} parent=67 // pred_fallthru
        _
    $region68: #{depthwise_forward.1} parent=5 // pred_fallthru
      _
  $region6: #{depthwise_forward.1} parent=0 // loop_footer
    %s22 = sadd.s32 1, %s18
  $region7: #{depthwise_forward.1} parent=0 // loop_footer_branch
    %17 = sbr.rel target = $region3
  $region8: #{depthwise_forward.1} parent=0 // loop_exit
    _

</llo_original>
